<compile_context>
chip_gen: v6e
topology: v6e:2x2x1
jax: 0.10.0
libtpu: 0.0.40
codegen_flags: <defaults>
</compile_context>

<pallas_src>
import functools

import jax
import jax.numpy as jnp
from jax import lax
from jax.experimental import pallas as pl
from jax.experimental.pallas import tpu as pltpu


def gat_kernel(x_ref, wqkv_ref, bqkv_ref, wo_ref, bo_ref, out_ref, *,
               num_heads, batch, seq, approx_recip):
    BL, _ = x_ref.shape
    H = wo_ref.shape[0]
    hs = H // num_heads

    # --- fused QKV projection: one lane-dense MXU pass (M=B*L, K=D2, N=3H) --
    # TODO(synk): at non-toy sizes, cast x / weights to bf16 (keep f32
    # accumulation via preferred_element_type) to hit the full-rate MXU paths.
    qkv = jnp.dot(x_ref[...], wqkv_ref[...],
                  preferred_element_type=jnp.float32) + bqkv_ref[...]

    wo = wo_ref[...]                                      # (H, H), loaded once
    # Whole-output f32 accumulator; output-projection bias folded into init
    # (replaces B per-batch zero-inits + bias adds).
    acc = jnp.broadcast_to(bo_ref[...], (BL, H)).astype(jnp.float32)

    # --- head-outer / batch-inner attention -------------------------------
    # All sub-128-lane head slices (q/k/v width hs, wo rows) are hoisted here
    # and taken once per head; everything inside the batch loop is an 8-row
    # sublane slice (free).
    for h in range(num_heads):
        c0 = h * hs
        qh = qkv[:, 0 * H + c0: 0 * H + c0 + hs]          # (BL, hs)
        kh = qkv[:, 1 * H + c0: 1 * H + c0 + hs]          # (BL, hs)
        vh = qkv[:, 2 * H + c0: 2 * H + c0 + hs]          # (BL, hs)
        wo_h = wo[c0:c0 + hs, :]                          # sublane row slice

        ctx_parts = []
        for b in range(batch):
            lo = b * seq
            qb = qh[lo:lo + seq, :]                       # sublane slices only
            kb = kh[lo:lo + seq, :]
            vb = vh[lo:lo + seq, :]

            # scores = qb @ kb^T (contract over hs).  The implicit (L, hs)
            # transpose per (b, h) is accepted: L is tiny and no extra XLU
            # work is added in this region.
            # TODO(synk): for large L, tile flash-style (online softmax over
            # kv tiles) instead of materializing (L, L) scores.
            s = lax.dot_general(qb, kb, (((1,), (1,)), ((), ())),
                                preferred_element_type=jnp.float32)  # (L, L)

            m = jnp.max(s, axis=-1, keepdims=True)
            p = jnp.exp(s - m)
            denom = jnp.sum(p, axis=-1, keepdims=True)    # (L, 1), >= 1
            # approx=True -> EUP vrcp (otherwise-idle slot); exact path kept
            # behind the flag for bit-close comparison against the reference.
            inv = pl.reciprocal(denom, approx=approx_recip)

            # normalize the small (L, hs) context, not the (L, L) probs
            ctx_parts.append(
                jnp.dot(p, vb, preferred_element_type=jnp.float32) * inv)

        # (BL, hs): sublane concat of 8-row pieces, then one projection
        # matmul per head (amortized over the batch), fused into the output.
        ctx_h = (jnp.concatenate(ctx_parts, axis=0)
                 if batch > 1 else ctx_parts[0])
        acc = acc + jnp.dot(ctx_h, wo_h, preferred_element_type=jnp.float32)

    # Single full-ref store (was B masked partial stores).
    out_ref[...] = acc.astype(out_ref.dtype)


def gat_forward(x, params, num_heads=4, approx_reciprocal=True):
    """x: [B, L, 2H] -> [B, L, H]"""
    wq, bq, wk, bk, wv, bv, wo, bo = params
    B, L, D2 = x.shape
    H = D2 // 2
    BL = B * L

    # Pack QKV into one lane-dense weight/bias (one-time XLA ops, outside kernel).
    wqkv = jnp.concatenate([wq, wk, wv], axis=1)          # (D2, 3H)
    bqkv = jnp.concatenate([bq, bk, bv], axis=1)          # (1, 3H)
    x2d = x.reshape(BL, D2)                               # fold batch into M

    kernel = functools.partial(gat_kernel, num_heads=num_heads, batch=B,
                               seq=L, approx_recip=approx_reciprocal)

    # TODO(synk): at production sizes, tile the M (=B*L) dimension with a
    # leading "parallel" grid axis (dual-TC win on v7x) and set
    # vmem_limit_bytes explicitly (v7x has 64 MiB VMEM vs 128 MiB v5e/v6e);
    # the whole-problem-in-VMEM single grid step below is for demo shapes,
    # where per-grid-step overhead (~0.35us) would dominate.
    out2d = pl.pallas_call(
        kernel,
        out_shape=jax.ShapeDtypeStruct((BL, H), x.dtype),
        grid_spec=pltpu.PrefetchScalarGridSpec(
            num_scalar_prefetch=0,
            grid=(1,),
            in_specs=[
                pl.BlockSpec((BL, D2), lambda i: (0, 0)),
                pl.BlockSpec((D2, 3 * H), lambda i: (0, 0)),
                pl.BlockSpec((1, 3 * H), lambda i: (0, 0)),
                pl.BlockSpec((H, H), lambda i: (0, 0)),
                pl.BlockSpec((1, H), lambda i: (0, 0)),
            ],
            out_specs=pl.BlockSpec((BL, H), lambda i: (0, 0)),
        ),
        compiler_params=pltpu.CompilerParams(
            dimension_semantics=("arbitrary",)),
    )(x2d, wqkv, bqkv, wo, bo)
    return out2d.reshape(B, L, H)


def gat_reference(x, params, num_heads=4):
    """Pure-JAX reference matching the PyTorch forward."""
    wq, bq, wk, bk, wv, bv, wo, bo = params
    B, L, D2 = x.shape
    H = D2 // 2
    hs = H // num_heads

    def split_heads(t):                                   # [B,L,H] -> [B,nh,L,hs]
        return t.reshape(B, L, num_heads, hs).transpose(0, 2, 1, 3)

    q = split_heads(x @ wq + bq[0])
    k = split_heads(x @ wk + bk[0])
    v = split_heads(x @ wv + bv[0])

    scores = jnp.einsum("bhqd,bhkd->bhqk", q, k)
    probs = jax.nn.softmax(scores, axis=-1)
    ctx = jnp.einsum("bhqk,bhkd->bhqd", probs, v)
    ctx = ctx.transpose(0, 2, 1, 3).reshape(B, L, H)
    return ctx @ wo + bo[0]


if __name__ == "__main__":
    B, L, hidden, num_heads = 2, 8, 32, 4
    D2 = hidden * 2

    key = jax.random.PRNGKey(0)
    ks = jax.random.split(key, 9)
    scale = 0.05
    x = jax.random.normal(ks[0], (B, L, D2), dtype=jnp.float32)
    wq = scale * jax.random.normal(ks[1], (D2, hidden), dtype=jnp.float32)
    bq = scale * jax.random.normal(ks[2], (1, hidden), dtype=jnp.float32)
    wk = scale * jax.random.normal(ks[3], (D2, hidden), dtype=jnp.float32)
    bk = scale * jax.random.normal(ks[4], (1, hidden), dtype=jnp.float32)
    wv = scale * jax.random.normal(ks[5], (D2, hidden), dtype=jnp.float32)
    bv = scale * jax.random.normal(ks[6], (1, hidden), dtype=jnp.float32)
    wo = scale * jax.random.normal(ks[7], (hidden, hidden), dtype=jnp.float32)
    bo = scale * jax.random.normal(ks[8], (1, hidden), dtype=jnp.float32)
    params = (wq, bq, wk, bk, wv, bv, wo, bo)

    ref = gat_reference(x, params, num_heads=num_heads)

    # Exact-reciprocal path: bit-close vs the reference.
    out = gat_forward(x, params, num_heads=num_heads, approx_reciprocal=False)
    out = jax.block_until_ready(out)
    assert out.shape == (B, L, hidden)
    assert jnp.allclose(out, ref, atol=1e-5, rtol=1e-5), "mismatch (exact recip)"

    # Default (EUP approx-reciprocal) path: looser tolerance.
    out_approx = gat_forward(x, params, num_heads=num_heads)
    out_approx = jax.block_until_ready(out_approx)
    assert jnp.allclose(out_approx, ref, atol=5e-3, rtol=5e-3), \
        "mismatch (approx recip)"

    print("KERNEL_OK")
</pallas_src>

<mosaic_0001>
module attributes {stable_mosaic.version = 11 : i64} {
  func.func @gat_kernel(%arg0: i32, %arg1: memref<16x64xf32, #tpu.memory_space<vmem>>, %arg2: memref<64x96xf32, #tpu.memory_space<vmem>>, %arg3: memref<1x96xf32, #tpu.memory_space<vmem>>, %arg4: memref<32x32xf32, #tpu.memory_space<vmem>>, %arg5: memref<1x32xf32, #tpu.memory_space<vmem>>, %arg6: memref<16x32xf32, #tpu.memory_space<vmem>>) attributes {dimension_semantics = [#tpu.dimension_semantics<arbitrary>], iteration_bounds = array<i64: 1>, scalar_prefetch = 0 : i64, scratch_operands = 0 : i64, tpu.core_type = #tpu.core_type<tc>, window_params = [{pipeline_mode = #tpu.pipeline_mode<synchronous>, transform_indices = @transform_0, window_bounds = array<i64: 16, 64>}, {pipeline_mode = #tpu.pipeline_mode<synchronous>, transform_indices = @transform_1, window_bounds = array<i64: 64, 96>}, {pipeline_mode = #tpu.pipeline_mode<synchronous>, transform_indices = @transform_2, window_bounds = array<i64: 1, 96>}, {pipeline_mode = #tpu.pipeline_mode<synchronous>, transform_indices = @transform_3, window_bounds = array<i64: 32, 32>}, {pipeline_mode = #tpu.pipeline_mode<synchronous>, transform_indices = @transform_4, window_bounds = array<i64: 1, 32>}, {pipeline_mode = #tpu.pipeline_mode<synchronous>, transform_indices = @transform_5, window_bounds = array<i64: 16, 32>}]} {
    %c0 = arith.constant 0 : index
    %c0_0 = arith.constant 0 : index
    %0 = vector.load %arg1[%c0, %c0_0] : memref<16x64xf32, #tpu.memory_space<vmem>>, vector<16x64xf32>
    %c0_1 = arith.constant 0 : index
    %c0_2 = arith.constant 0 : index
    %1 = vector.load %arg2[%c0_1, %c0_2] : memref<64x96xf32, #tpu.memory_space<vmem>>, vector<64x96xf32>
    %cst = arith.constant dense<0.000000e+00> : vector<16x96xf32>
    %2 = tpu.matmul %0, %1, %cst {dimension_numbers = #tpu.dot_dimension_numbers<[1], [0], [0], [1], [0, 0, 1, 1], [], []>} : vector<16x64xf32>, vector<64x96xf32>, vector<16x96xf32> -> vector<16x96xf32>
    %c0_3 = arith.constant 0 : index
    %c0_4 = arith.constant 0 : index
    %3 = vector.load %arg3[%c0_3, %c0_4] : memref<1x96xf32, #tpu.memory_space<vmem>>, vector<1x96xf32>
    %4 = vector.broadcast %3 : vector<1x96xf32> to vector<16x96xf32>
    %5 = arith.addf %2, %4 : vector<16x96xf32>
    %c0_5 = arith.constant 0 : index
    %c0_6 = arith.constant 0 : index
    %6 = vector.load %arg4[%c0_5, %c0_6] : memref<32x32xf32, #tpu.memory_space<vmem>>, vector<32x32xf32>
    %c0_7 = arith.constant 0 : index
    %c0_8 = arith.constant 0 : index
    %7 = vector.load %arg5[%c0_7, %c0_8] : memref<1x32xf32, #tpu.memory_space<vmem>>, vector<1x32xf32>
    %8 = vector.shape_cast %7 : vector<1x32xf32> to vector<1x32xf32>
    %9 = vector.broadcast %8 : vector<1x32xf32> to vector<16x32xf32>
    %10 = vector.extract_strided_slice %5 {offsets = [0, 0], sizes = [16, 8], strides = [1, 1]} : vector<16x96xf32> to vector<16x8xf32>
    %11 = vector.extract_strided_slice %5 {offsets = [0, 32], sizes = [16, 8], strides = [1, 1]} : vector<16x96xf32> to vector<16x8xf32>
    %12 = vector.extract_strided_slice %5 {offsets = [0, 64], sizes = [16, 8], strides = [1, 1]} : vector<16x96xf32> to vector<16x8xf32>
    %13 = vector.extract_strided_slice %6 {offsets = [0, 0], sizes = [8, 32], strides = [1, 1]} : vector<32x32xf32> to vector<8x32xf32>
    %14 = vector.extract_strided_slice %10 {offsets = [0, 0], sizes = [8, 8], strides = [1, 1]} : vector<16x8xf32> to vector<8x8xf32>
    %15 = vector.extract_strided_slice %11 {offsets = [0, 0], sizes = [8, 8], strides = [1, 1]} : vector<16x8xf32> to vector<8x8xf32>
    %16 = vector.extract_strided_slice %12 {offsets = [0, 0], sizes = [8, 8], strides = [1, 1]} : vector<16x8xf32> to vector<8x8xf32>
    %cst_9 = arith.constant dense<0.000000e+00> : vector<8x8xf32>
    %17 = tpu.matmul %14, %15, %cst_9 {dimension_numbers = #tpu.dot_dimension_numbers<[1], [1], [0], [0], [0, 0, 1, 0], [], []>} : vector<8x8xf32>, vector<8x8xf32>, vector<8x8xf32> -> vector<8x8xf32>
    %cst_10 = arith.constant dense<0xFF800000> : vector<8xf32>
    %18 = vector.multi_reduction <maximumf>, %17, %cst_10 [1] : vector<8x8xf32> to vector<8xf32>
    %19 = vector.shape_cast %18 : vector<8xf32> to vector<8x1xf32>
    %20 = vector.broadcast %19 : vector<8x1xf32> to vector<8x8xf32>
    %21 = arith.subf %17, %20 : vector<8x8xf32>
    %22 = math.exp %21 : vector<8x8xf32>
    %cst_11 = arith.constant dense<0.000000e+00> : vector<8xf32>
    %23 = vector.multi_reduction <add>, %22, %cst_11 [1] : vector<8x8xf32> to vector<8xf32>
    %24 = vector.shape_cast %23 : vector<8xf32> to vector<8x1xf32>
    %25 = tpu.reciprocal %24 : vector<8x1xf32> -> vector<8x1xf32>
    %cst_12 = arith.constant dense<0.000000e+00> : vector<8x8xf32>
    %26 = tpu.matmul %22, %16, %cst_12 {dimension_numbers = #tpu.dot_dimension_numbers<[1], [0], [0], [1], [0, 0, 1, 1], [], []>} : vector<8x8xf32>, vector<8x8xf32>, vector<8x8xf32> -> vector<8x8xf32>
    %27 = vector.broadcast %25 : vector<8x1xf32> to vector<8x8xf32>
    %28 = arith.mulf %26, %27 : vector<8x8xf32>
    %29 = vector.extract_strided_slice %10 {offsets = [8, 0], sizes = [8, 8], strides = [1, 1]} : vector<16x8xf32> to vector<8x8xf32>
    %30 = vector.extract_strided_slice %11 {offsets = [8, 0], sizes = [8, 8], strides = [1, 1]} : vector<16x8xf32> to vector<8x8xf32>
    %31 = vector.extract_strided_slice %12 {offsets = [8, 0], sizes = [8, 8], strides = [1, 1]} : vector<16x8xf32> to vector<8x8xf32>
    %cst_13 = arith.constant dense<0.000000e+00> : vector<8x8xf32>
    %32 = tpu.matmul %29, %30, %cst_13 {dimension_numbers = #tpu.dot_dimension_numbers<[1], [1], [0], [0], [0, 0, 1, 0], [], []>} : vector<8x8xf32>, vector<8x8xf32>, vector<8x8xf32> -> vector<8x8xf32>
    %cst_14 = arith.constant dense<0xFF800000> : vector<8xf32>
    %33 = vector.multi_reduction <maximumf>, %32, %cst_14 [1] : vector<8x8xf32> to vector<8xf32>
    %34 = vector.shape_cast %33 : vector<8xf32> to vector<8x1xf32>
    %35 = vector.broadcast %34 : vector<8x1xf32> to vector<8x8xf32>
    %36 = arith.subf %32, %35 : vector<8x8xf32>
    %37 = math.exp %36 : vector<8x8xf32>
    %cst_15 = arith.constant dense<0.000000e+00> : vector<8xf32>
    %38 = vector.multi_reduction <add>, %37, %cst_15 [1] : vector<8x8xf32> to vector<8xf32>
    %39 = vector.shape_cast %38 : vector<8xf32> to vector<8x1xf32>
    %40 = tpu.reciprocal %39 : vector<8x1xf32> -> vector<8x1xf32>
    %cst_16 = arith.constant dense<0.000000e+00> : vector<8x8xf32>
    %41 = tpu.matmul %37, %31, %cst_16 {dimension_numbers = #tpu.dot_dimension_numbers<[1], [0], [0], [1], [0, 0, 1, 1], [], []>} : vector<8x8xf32>, vector<8x8xf32>, vector<8x8xf32> -> vector<8x8xf32>
    %42 = vector.broadcast %40 : vector<8x1xf32> to vector<8x8xf32>
    %43 = arith.mulf %41, %42 : vector<8x8xf32>
    %44 = tpu.concatenate %28, %43 in 0 : vector<8x8xf32>, vector<8x8xf32> -> vector<16x8xf32>
    %cst_17 = arith.constant dense<0.000000e+00> : vector<16x32xf32>
    %45 = tpu.matmul %44, %13, %cst_17 {dimension_numbers = #tpu.dot_dimension_numbers<[1], [0], [0], [1], [0, 0, 1, 1], [], []>} : vector<16x8xf32>, vector<8x32xf32>, vector<16x32xf32> -> vector<16x32xf32>
    %46 = arith.addf %9, %45 : vector<16x32xf32>
    %47 = vector.extract_strided_slice %5 {offsets = [0, 8], sizes = [16, 8], strides = [1, 1]} : vector<16x96xf32> to vector<16x8xf32>
    %48 = vector.extract_strided_slice %5 {offsets = [0, 40], sizes = [16, 8], strides = [1, 1]} : vector<16x96xf32> to vector<16x8xf32>
    %49 = vector.extract_strided_slice %5 {offsets = [0, 72], sizes = [16, 8], strides = [1, 1]} : vector<16x96xf32> to vector<16x8xf32>
    %50 = vector.extract_strided_slice %6 {offsets = [8, 0], sizes = [8, 32], strides = [1, 1]} : vector<32x32xf32> to vector<8x32xf32>
    %51 = vector.extract_strided_slice %47 {offsets = [0, 0], sizes = [8, 8], strides = [1, 1]} : vector<16x8xf32> to vector<8x8xf32>
    %52 = vector.extract_strided_slice %48 {offsets = [0, 0], sizes = [8, 8], strides = [1, 1]} : vector<16x8xf32> to vector<8x8xf32>
    %53 = vector.extract_strided_slice %49 {offsets = [0, 0], sizes = [8, 8], strides = [1, 1]} : vector<16x8xf32> to vector<8x8xf32>
    %cst_18 = arith.constant dense<0.000000e+00> : vector<8x8xf32>
    %54 = tpu.matmul %51, %52, %cst_18 {dimension_numbers = #tpu.dot_dimension_numbers<[1], [1], [0], [0], [0, 0, 1, 0], [], []>} : vector<8x8xf32>, vector<8x8xf32>, vector<8x8xf32> -> vector<8x8xf32>
    %cst_19 = arith.constant dense<0xFF800000> : vector<8xf32>
    %55 = vector.multi_reduction <maximumf>, %54, %cst_19 [1] : vector<8x8xf32> to vector<8xf32>
    %56 = vector.shape_cast %55 : vector<8xf32> to vector<8x1xf32>
    %57 = vector.broadcast %56 : vector<8x1xf32> to vector<8x8xf32>
    %58 = arith.subf %54, %57 : vector<8x8xf32>
    %59 = math.exp %58 : vector<8x8xf32>
    %cst_20 = arith.constant dense<0.000000e+00> : vector<8xf32>
    %60 = vector.multi_reduction <add>, %59, %cst_20 [1] : vector<8x8xf32> to vector<8xf32>
    %61 = vector.shape_cast %60 : vector<8xf32> to vector<8x1xf32>
    %62 = tpu.reciprocal %61 : vector<8x1xf32> -> vector<8x1xf32>
    %cst_21 = arith.constant dense<0.000000e+00> : vector<8x8xf32>
    %63 = tpu.matmul %59, %53, %cst_21 {dimension_numbers = #tpu.dot_dimension_numbers<[1], [0], [0], [1], [0, 0, 1, 1], [], []>} : vector<8x8xf32>, vector<8x8xf32>, vector<8x8xf32> -> vector<8x8xf32>
    %64 = vector.broadcast %62 : vector<8x1xf32> to vector<8x8xf32>
    %65 = arith.mulf %63, %64 : vector<8x8xf32>
    %66 = vector.extract_strided_slice %47 {offsets = [8, 0], sizes = [8, 8], strides = [1, 1]} : vector<16x8xf32> to vector<8x8xf32>
    %67 = vector.extract_strided_slice %48 {offsets = [8, 0], sizes = [8, 8], strides = [1, 1]} : vector<16x8xf32> to vector<8x8xf32>
    %68 = vector.extract_strided_slice %49 {offsets = [8, 0], sizes = [8, 8], strides = [1, 1]} : vector<16x8xf32> to vector<8x8xf32>
    %cst_22 = arith.constant dense<0.000000e+00> : vector<8x8xf32>
    %69 = tpu.matmul %66, %67, %cst_22 {dimension_numbers = #tpu.dot_dimension_numbers<[1], [1], [0], [0], [0, 0, 1, 0], [], []>} : vector<8x8xf32>, vector<8x8xf32>, vector<8x8xf32> -> vector<8x8xf32>
    %cst_23 = arith.constant dense<0xFF800000> : vector<8xf32>
    %70 = vector.multi_reduction <maximumf>, %69, %cst_23 [1] : vector<8x8xf32> to vector<8xf32>
    %71 = vector.shape_cast %70 : vector<8xf32> to vector<8x1xf32>
    %72 = vector.broadcast %71 : vector<8x1xf32> to vector<8x8xf32>
    %73 = arith.subf %69, %72 : vector<8x8xf32>
    %74 = math.exp %73 : vector<8x8xf32>
    %cst_24 = arith.constant dense<0.000000e+00> : vector<8xf32>
    %75 = vector.multi_reduction <add>, %74, %cst_24 [1] : vector<8x8xf32> to vector<8xf32>
    %76 = vector.shape_cast %75 : vector<8xf32> to vector<8x1xf32>
    %77 = tpu.reciprocal %76 : vector<8x1xf32> -> vector<8x1xf32>
    %cst_25 = arith.constant dense<0.000000e+00> : vector<8x8xf32>
    %78 = tpu.matmul %74, %68, %cst_25 {dimension_numbers = #tpu.dot_dimension_numbers<[1], [0], [0], [1], [0, 0, 1, 1], [], []>} : vector<8x8xf32>, vector<8x8xf32>, vector<8x8xf32> -> vector<8x8xf32>
    %79 = vector.broadcast %77 : vector<8x1xf32> to vector<8x8xf32>
    %80 = arith.mulf %78, %79 : vector<8x8xf32>
    %81 = tpu.concatenate %65, %80 in 0 : vector<8x8xf32>, vector<8x8xf32> -> vector<16x8xf32>
    %cst_26 = arith.constant dense<0.000000e+00> : vector<16x32xf32>
    %82 = tpu.matmul %81, %50, %cst_26 {dimension_numbers = #tpu.dot_dimension_numbers<[1], [0], [0], [1], [0, 0, 1, 1], [], []>} : vector<16x8xf32>, vector<8x32xf32>, vector<16x32xf32> -> vector<16x32xf32>
    %83 = arith.addf %46, %82 : vector<16x32xf32>
    %84 = vector.extract_strided_slice %5 {offsets = [0, 16], sizes = [16, 8], strides = [1, 1]} : vector<16x96xf32> to vector<16x8xf32>
    %85 = vector.extract_strided_slice %5 {offsets = [0, 48], sizes = [16, 8], strides = [1, 1]} : vector<16x96xf32> to vector<16x8xf32>
    %86 = vector.extract_strided_slice %5 {offsets = [0, 80], sizes = [16, 8], strides = [1, 1]} : vector<16x96xf32> to vector<16x8xf32>
    %87 = vector.extract_strided_slice %6 {offsets = [16, 0], sizes = [8, 32], strides = [1, 1]} : vector<32x32xf32> to vector<8x32xf32>
    %88 = vector.extract_strided_slice %84 {offsets = [0, 0], sizes = [8, 8], strides = [1, 1]} : vector<16x8xf32> to vector<8x8xf32>
    %89 = vector.extract_strided_slice %85 {offsets = [0, 0], sizes = [8, 8], strides = [1, 1]} : vector<16x8xf32> to vector<8x8xf32>
    %90 = vector.extract_strided_slice %86 {offsets = [0, 0], sizes = [8, 8], strides = [1, 1]} : vector<16x8xf32> to vector<8x8xf32>
    %cst_27 = arith.constant dense<0.000000e+00> : vector<8x8xf32>
    %91 = tpu.matmul %88, %89, %cst_27 {dimension_numbers = #tpu.dot_dimension_numbers<[1], [1], [0], [0], [0, 0, 1, 0], [], []>} : vector<8x8xf32>, vector<8x8xf32>, vector<8x8xf32> -> vector<8x8xf32>
    %cst_28 = arith.constant dense<0xFF800000> : vector<8xf32>
    %92 = vector.multi_reduction <maximumf>, %91, %cst_28 [1] : vector<8x8xf32> to vector<8xf32>
    %93 = vector.shape_cast %92 : vector<8xf32> to vector<8x1xf32>
    %94 = vector.broadcast %93 : vector<8x1xf32> to vector<8x8xf32>
    %95 = arith.subf %91, %94 : vector<8x8xf32>
    %96 = math.exp %95 : vector<8x8xf32>
    %cst_29 = arith.constant dense<0.000000e+00> : vector<8xf32>
    %97 = vector.multi_reduction <add>, %96, %cst_29 [1] : vector<8x8xf32> to vector<8xf32>
    %98 = vector.shape_cast %97 : vector<8xf32> to vector<8x1xf32>
    %99 = tpu.reciprocal %98 : vector<8x1xf32> -> vector<8x1xf32>
    %cst_30 = arith.constant dense<0.000000e+00> : vector<8x8xf32>
    %100 = tpu.matmul %96, %90, %cst_30 {dimension_numbers = #tpu.dot_dimension_numbers<[1], [0], [0], [1], [0, 0, 1, 1], [], []>} : vector<8x8xf32>, vector<8x8xf32>, vector<8x8xf32> -> vector<8x8xf32>
    %101 = vector.broadcast %99 : vector<8x1xf32> to vector<8x8xf32>
    %102 = arith.mulf %100, %101 : vector<8x8xf32>
    %103 = vector.extract_strided_slice %84 {offsets = [8, 0], sizes = [8, 8], strides = [1, 1]} : vector<16x8xf32> to vector<8x8xf32>
    %104 = vector.extract_strided_slice %85 {offsets = [8, 0], sizes = [8, 8], strides = [1, 1]} : vector<16x8xf32> to vector<8x8xf32>
    %105 = vector.extract_strided_slice %86 {offsets = [8, 0], sizes = [8, 8], strides = [1, 1]} : vector<16x8xf32> to vector<8x8xf32>
    %cst_31 = arith.constant dense<0.000000e+00> : vector<8x8xf32>
    %106 = tpu.matmul %103, %104, %cst_31 {dimension_numbers = #tpu.dot_dimension_numbers<[1], [1], [0], [0], [0, 0, 1, 0], [], []>} : vector<8x8xf32>, vector<8x8xf32>, vector<8x8xf32> -> vector<8x8xf32>
    %cst_32 = arith.constant dense<0xFF800000> : vector<8xf32>
    %107 = vector.multi_reduction <maximumf>, %106, %cst_32 [1] : vector<8x8xf32> to vector<8xf32>
    %108 = vector.shape_cast %107 : vector<8xf32> to vector<8x1xf32>
    %109 = vector.broadcast %108 : vector<8x1xf32> to vector<8x8xf32>
    %110 = arith.subf %106, %109 : vector<8x8xf32>
    %111 = math.exp %110 : vector<8x8xf32>
    %cst_33 = arith.constant dense<0.000000e+00> : vector<8xf32>
    %112 = vector.multi_reduction <add>, %111, %cst_33 [1] : vector<8x8xf32> to vector<8xf32>
    %113 = vector.shape_cast %112 : vector<8xf32> to vector<8x1xf32>
    %114 = tpu.reciprocal %113 : vector<8x1xf32> -> vector<8x1xf32>
    %cst_34 = arith.constant dense<0.000000e+00> : vector<8x8xf32>
    %115 = tpu.matmul %111, %105, %cst_34 {dimension_numbers = #tpu.dot_dimension_numbers<[1], [0], [0], [1], [0, 0, 1, 1], [], []>} : vector<8x8xf32>, vector<8x8xf32>, vector<8x8xf32> -> vector<8x8xf32>
    %116 = vector.broadcast %114 : vector<8x1xf32> to vector<8x8xf32>
    %117 = arith.mulf %115, %116 : vector<8x8xf32>
    %118 = tpu.concatenate %102, %117 in 0 : vector<8x8xf32>, vector<8x8xf32> -> vector<16x8xf32>
    %cst_35 = arith.constant dense<0.000000e+00> : vector<16x32xf32>
    %119 = tpu.matmul %118, %87, %cst_35 {dimension_numbers = #tpu.dot_dimension_numbers<[1], [0], [0], [1], [0, 0, 1, 1], [], []>} : vector<16x8xf32>, vector<8x32xf32>, vector<16x32xf32> -> vector<16x32xf32>
    %120 = arith.addf %83, %119 : vector<16x32xf32>
    %121 = vector.extract_strided_slice %5 {offsets = [0, 24], sizes = [16, 8], strides = [1, 1]} : vector<16x96xf32> to vector<16x8xf32>
    %122 = vector.extract_strided_slice %5 {offsets = [0, 56], sizes = [16, 8], strides = [1, 1]} : vector<16x96xf32> to vector<16x8xf32>
    %123 = vector.extract_strided_slice %5 {offsets = [0, 88], sizes = [16, 8], strides = [1, 1]} : vector<16x96xf32> to vector<16x8xf32>
    %124 = vector.extract_strided_slice %6 {offsets = [24, 0], sizes = [8, 32], strides = [1, 1]} : vector<32x32xf32> to vector<8x32xf32>
    %125 = vector.extract_strided_slice %121 {offsets = [0, 0], sizes = [8, 8], strides = [1, 1]} : vector<16x8xf32> to vector<8x8xf32>
    %126 = vector.extract_strided_slice %122 {offsets = [0, 0], sizes = [8, 8], strides = [1, 1]} : vector<16x8xf32> to vector<8x8xf32>
    %127 = vector.extract_strided_slice %123 {offsets = [0, 0], sizes = [8, 8], strides = [1, 1]} : vector<16x8xf32> to vector<8x8xf32>
    %cst_36 = arith.constant dense<0.000000e+00> : vector<8x8xf32>
    %128 = tpu.matmul %125, %126, %cst_36 {dimension_numbers = #tpu.dot_dimension_numbers<[1], [1], [0], [0], [0, 0, 1, 0], [], []>} : vector<8x8xf32>, vector<8x8xf32>, vector<8x8xf32> -> vector<8x8xf32>
    %cst_37 = arith.constant dense<0xFF800000> : vector<8xf32>
    %129 = vector.multi_reduction <maximumf>, %128, %cst_37 [1] : vector<8x8xf32> to vector<8xf32>
    %130 = vector.shape_cast %129 : vector<8xf32> to vector<8x1xf32>
    %131 = vector.broadcast %130 : vector<8x1xf32> to vector<8x8xf32>
    %132 = arith.subf %128, %131 : vector<8x8xf32>
    %133 = math.exp %132 : vector<8x8xf32>
    %cst_38 = arith.constant dense<0.000000e+00> : vector<8xf32>
    %134 = vector.multi_reduction <add>, %133, %cst_38 [1] : vector<8x8xf32> to vector<8xf32>
    %135 = vector.shape_cast %134 : vector<8xf32> to vector<8x1xf32>
    %136 = tpu.reciprocal %135 : vector<8x1xf32> -> vector<8x1xf32>
    %cst_39 = arith.constant dense<0.000000e+00> : vector<8x8xf32>
    %137 = tpu.matmul %133, %127, %cst_39 {dimension_numbers = #tpu.dot_dimension_numbers<[1], [0], [0], [1], [0, 0, 1, 1], [], []>} : vector<8x8xf32>, vector<8x8xf32>, vector<8x8xf32> -> vector<8x8xf32>
    %138 = vector.broadcast %136 : vector<8x1xf32> to vector<8x8xf32>
    %139 = arith.mulf %137, %138 : vector<8x8xf32>
    %140 = vector.extract_strided_slice %121 {offsets = [8, 0], sizes = [8, 8], strides = [1, 1]} : vector<16x8xf32> to vector<8x8xf32>
    %141 = vector.extract_strided_slice %122 {offsets = [8, 0], sizes = [8, 8], strides = [1, 1]} : vector<16x8xf32> to vector<8x8xf32>
    %142 = vector.extract_strided_slice %123 {offsets = [8, 0], sizes = [8, 8], strides = [1, 1]} : vector<16x8xf32> to vector<8x8xf32>
    %cst_40 = arith.constant dense<0.000000e+00> : vector<8x8xf32>
    %143 = tpu.matmul %140, %141, %cst_40 {dimension_numbers = #tpu.dot_dimension_numbers<[1], [1], [0], [0], [0, 0, 1, 0], [], []>} : vector<8x8xf32>, vector<8x8xf32>, vector<8x8xf32> -> vector<8x8xf32>
    %cst_41 = arith.constant dense<0xFF800000> : vector<8xf32>
    %144 = vector.multi_reduction <maximumf>, %143, %cst_41 [1] : vector<8x8xf32> to vector<8xf32>
    %145 = vector.shape_cast %144 : vector<8xf32> to vector<8x1xf32>
    %146 = vector.broadcast %145 : vector<8x1xf32> to vector<8x8xf32>
    %147 = arith.subf %143, %146 : vector<8x8xf32>
    %148 = math.exp %147 : vector<8x8xf32>
    %cst_42 = arith.constant dense<0.000000e+00> : vector<8xf32>
    %149 = vector.multi_reduction <add>, %148, %cst_42 [1] : vector<8x8xf32> to vector<8xf32>
    %150 = vector.shape_cast %149 : vector<8xf32> to vector<8x1xf32>
    %151 = tpu.reciprocal %150 : vector<8x1xf32> -> vector<8x1xf32>
    %cst_43 = arith.constant dense<0.000000e+00> : vector<8x8xf32>
    %152 = tpu.matmul %148, %142, %cst_43 {dimension_numbers = #tpu.dot_dimension_numbers<[1], [0], [0], [1], [0, 0, 1, 1], [], []>} : vector<8x8xf32>, vector<8x8xf32>, vector<8x8xf32> -> vector<8x8xf32>
    %153 = vector.broadcast %151 : vector<8x1xf32> to vector<8x8xf32>
    %154 = arith.mulf %152, %153 : vector<8x8xf32>
    %155 = tpu.concatenate %139, %154 in 0 : vector<8x8xf32>, vector<8x8xf32> -> vector<16x8xf32>
    %cst_44 = arith.constant dense<0.000000e+00> : vector<16x32xf32>
    %156 = tpu.matmul %155, %124, %cst_44 {dimension_numbers = #tpu.dot_dimension_numbers<[1], [0], [0], [1], [0, 0, 1, 1], [], []>} : vector<16x8xf32>, vector<8x32xf32>, vector<16x32xf32> -> vector<16x32xf32>
    %157 = arith.addf %120, %156 : vector<16x32xf32>
    %c0_45 = arith.constant 0 : index
    %c0_46 = arith.constant 0 : index
    %158 = vector.load %arg6[%c0_45, %c0_46] : memref<16x32xf32, #tpu.memory_space<vmem>>, vector<16x32xf32>
    tpu.vector_store %arg6[%c0_45, %c0_46], %157 {strides = array<i32>} : memref<16x32xf32, #tpu.memory_space<vmem>>, vector<16x32xf32>,
    return
  }
  func.func @transform_0(%arg0: i32) -> (i32, i32) {
    %c0_i32 = arith.constant 0 : i32
    %c0_i32_0 = arith.constant 0 : i32
    %c0_i32_1 = arith.constant 0 : i32
    return %c0_i32, %c0_i32_0 : i32, i32
  }
  func.func @transform_1(%arg0: i32) -> (i32, i32) {
    %c0_i32 = arith.constant 0 : i32
    %c0_i32_0 = arith.constant 0 : i32
    %c0_i32_1 = arith.constant 0 : i32
    return %c0_i32, %c0_i32_0 : i32, i32
  }
  func.func @transform_2(%arg0: i32) -> (i32, i32) {
    %c0_i32 = arith.constant 0 : i32
    %c0_i32_0 = arith.constant 0 : i32
    %c0_i32_1 = arith.constant 0 : i32
    return %c0_i32, %c0_i32_0 : i32, i32
  }
  func.func @transform_3(%arg0: i32) -> (i32, i32) {
    %c0_i32 = arith.constant 0 : i32
    %c0_i32_0 = arith.constant 0 : i32
    %c0_i32_1 = arith.constant 0 : i32
    return %c0_i32, %c0_i32_0 : i32, i32
  }
  func.func @transform_4(%arg0: i32) -> (i32, i32) {
    %c0_i32 = arith.constant 0 : i32
    %c0_i32_0 = arith.constant 0 : i32
    %c0_i32_1 = arith.constant 0 : i32
    return %c0_i32, %c0_i32_0 : i32, i32
  }
  func.func @transform_5(%arg0: i32) -> (i32, i32) {
    %c0_i32 = arith.constant 0 : i32
    %c0_i32_0 = arith.constant 0 : i32
    %c0_i32_1 = arith.constant 0 : i32
    return %c0_i32, %c0_i32_0 : i32, i32
  }
}

</mosaic_0001>

<llo_original>
// kernel: tpu_custom_call.1
$region0: #{tpu_custom_call.1}
  #allocation0 [shape = 'u32[]', space=smem, size = 0x4, offset = 0x4, fixed_abs, tag = 'smem constant byte address 0x4 - core index']
  #allocation1 [shape = 'u32[144,128]{1,0:T(1,128)}', space=vmem, size = 0x12000, scoped, tag = 'internal scratch']
  %s0 = inlined_call_operand.hbm [shape: f32[16,64], index: 0, kind: input, shape index: {}]
  %s1 = inlined_call_operand.hbm [shape: f32[64,96], index: 1, kind: input, shape index: {}]
  %s2 = inlined_call_operand.vmem [shape: f32[1,96], index: 2, kind: input, shape index: {}]
  %s3 = inlined_call_operand.hbm [shape: f32[32,32], index: 3, kind: input, shape index: {}]
  %s4 = inlined_call_operand.vmem [shape: f32[1,32], index: 4, kind: input, shape index: {}]
  %s5 = inlined_call_operand.hbm [shape: f32[16,32], index: 5, kind: output, shape index: {}]
  %s6 = sld [smem:[#allocation0]]
  $region42: #{tpu_custom_call.1} parent=0
    _
  %s8 = ssub.s32 1, %s6
  %s9 = scalar_select 0, %s8, %s6
  $region1: #{tpu_custom_call.1} parent=0
    #allocation2 [shape = 'u8[8192]{0}', space=vmem, size = 0x2000, scoped, tag = 'input window, operand 0, single buffered']
    #allocation3 [shape = 's32[1]{0}', space=sflag, size = 0x4, scoped, tag = 'scoped memory for tpu_custom_call.1']
    #allocation4 [shape = 's32[1]{0}', space=sflag, size = 0x4, scoped, tag = 'scoped memory for tpu_custom_call.1']
    #allocation5 [shape = 'u8[32768]{0}', space=vmem, size = 0x8000, scoped, tag = 'input window, operand 1, single buffered']
    #allocation6 [shape = 's32[1]{0}', space=sflag, size = 0x4, scoped, tag = 'scoped memory for tpu_custom_call.1']
    #allocation7 [shape = 'u8[16384]{0}', space=vmem, size = 0x4000, scoped, tag = 'input window, operand 3, single buffered']
    #allocation8 [shape = 'u8[8192]{0}', space=vmem, size = 0x2000, scoped, tag = 'output window, operand 0, single buffered']
    %10 = vsyncpa [#allocation3], 0
    %11 = vsyncpa [#allocation6], 0
    %12 = vsyncpa [#allocation4], 0
    // Predicated region
    $region2: #{tpu_custom_call.1} parent=1 // pred_check
      _
    $region3: #{tpu_custom_call.1} parent=1 // pred_check_branch
      %14 = sbr.rel (0) target = $region5
    $region4: #{tpu_custom_call.1} parent=1 // pred_region
      %s16 = ssub.s32 256, 256
      %17 = vsyncadd [#allocation3], %s16
      %s18 = sshll.u32 [#allocation2], 4
      %s19 = int_to_ptr.vmem [resolvable:$true] %s18
      %24 = dma.hbm_to_vmem [thread:$0]  %s0, 256, %s19, [#allocation3], 128, 128, 8
    $region5: #{tpu_custom_call.1} parent=1 // pred_fallthru
      _
    // Predicated region
    $region6: #{tpu_custom_call.1} parent=1 // pred_check
      _
    $region7: #{tpu_custom_call.1} parent=1 // pred_check_branch
      %26 = sbr.rel (0) target = $region9
    $region8: #{tpu_custom_call.1} parent=1 // pred_region
      %s28 = ssub.s32 1024, 1024
      %29 = vsyncadd [#allocation6], %s28
      %s30 = sshll.u32 [#allocation5], 4
      %s31 = int_to_ptr.vmem [resolvable:$true] %s30
      %36 = dma.hbm_to_vmem [thread:$0]  %s1, 1024, %s31, [#allocation6], 128, 128, 8
    $region9: #{tpu_custom_call.1} parent=1 // pred_fallthru
      _
    // Predicated region
    $region10: #{tpu_custom_call.1} parent=1 // pred_check
      _
    $region11: #{tpu_custom_call.1} parent=1 // pred_check_branch
      %38 = sbr.rel (0) target = $region13
    $region12: #{tpu_custom_call.1} parent=1 // pred_region
      _
    $region13: #{tpu_custom_call.1} parent=1 // pred_fallthru
      _
    // Predicated region
    $region14: #{tpu_custom_call.1} parent=1 // pred_check
      _
    $region15: #{tpu_custom_call.1} parent=1 // pred_check_branch
      %40 = sbr.rel (0) target = $region17
    $region16: #{tpu_custom_call.1} parent=1 // pred_region
      %s42 = ssub.s32 512, 512
      %43 = vsyncadd [#allocation6], %s42
      %s44 = sshll.u32 [#allocation7], 4
      %s45 = int_to_ptr.vmem [resolvable:$true] %s44
      %50 = dma.hbm_to_vmem [thread:$0]  %s3, 512, %s45, [#allocation6], 128, 128, 8
    $region17: #{tpu_custom_call.1} parent=1 // pred_fallthru
      _
    // Predicated region
    $region18: #{tpu_custom_call.1} parent=1 // pred_check
      _
    $region19: #{tpu_custom_call.1} parent=1 // pred_check_branch
      %52 = sbr.rel (0) target = $region21
    $region20: #{tpu_custom_call.1} parent=1 // pred_region
      _
    $region21: #{tpu_custom_call.1} parent=1 // pred_fallthru
      _
    // Predicated region
    $region22: #{tpu_custom_call.1} parent=1 // pred_check
      _
    $region23: #{tpu_custom_call.1} parent=1 // pred_check_branch
      %54 = sbr.rel (0) target = $region25
    $region24: #{tpu_custom_call.1} parent=1 // pred_region
      %55 = dma.done [#allocation3], 256
    $region25: #{tpu_custom_call.1} parent=1 // pred_fallthru
      _
    // Predicated region
    $region26: #{tpu_custom_call.1} parent=1 // pred_check
      _
    $region27: #{tpu_custom_call.1} parent=1 // pred_check_branch
      %57 = sbr.rel (0) target = $region29
    $region28: #{tpu_custom_call.1} parent=1 // pred_region
      %58 = dma.done [#allocation6], 1024
    $region29: #{tpu_custom_call.1} parent=1 // pred_fallthru
      _
    // Predicated region
    $region30: #{tpu_custom_call.1} parent=1 // pred_check
      _
    $region31: #{tpu_custom_call.1} parent=1 // pred_check_branch
      %60 = sbr.rel (0) target = $region33
    $region32: #{tpu_custom_call.1} parent=1 // pred_region
      %61 = dma.done [#allocation6], 512
    $region33: #{tpu_custom_call.1} parent=1 // pred_fallthru
      _
    %v62 = vld [vmem:[#allocation2] sm:$0xff]
    %v63 = vld [vmem:[#allocation2 + $0x8] sm:$0xff]
    %v64 = vld [vmem:[#allocation5] sm:$0xff]
    %v65 = vld [vmem:[#allocation5 + $0x8] sm:$0xff]
    %v66 = vld [vmem:[#allocation5 + $0x10] sm:$0xff]
    %v67 = vld [vmem:[#allocation5 + $0x18] sm:$0xff]
    %v68 = vld [vmem:[#allocation5 + $0x20] sm:$0xff]
    %v69 = vld [vmem:[#allocation5 + $0x28] sm:$0xff]
    %v70 = vld [vmem:[#allocation5 + $0x30] sm:$0xff]
    %v71 = vld [vmem:[#allocation5 + $0x38] sm:$0xff]
    %v72 = vld [vmem:[%s2] sm:$0x1]
    %v74 = vlaneseq
    %v75 = vshrl.u32 %v74, 7
    %v76 = vsub.s32 0, %v75
    %v77 = vrot.slane %v72, %v76
    %vm79 = vcmask 523264
    %v81 = vsel %vm79, %v62, 0
    %v84 = vsel %vm79, %v63, 0
    %86 = vmatprep.subr.mxu0 0.0
    %87 = vmatpush1.msra.mxu0 0.0
    %88 = vmatprep.subr.mxu0 0.0
    %89 = vmatpush1.msra.mxu0 0.0
    %90 = vmatprep.subr.mxu0 0.0
    %91 = vmatpush1.msra.mxu0 0.0
    %92 = vmatprep.subr.mxu0 0.0
    %93 = vmatpush1.msra.mxu0 0.0
    %94 = vmatprep.subr.mxu0 0.0
    %95 = vmatpush1.msra.mxu0 0.0
    %96 = vmatprep.subr.mxu0 0.0
    %97 = vmatpush1.msra.mxu0 0.0
    %98 = vmatprep.subr.mxu0 0.0
    %99 = vmatpush1.msra.mxu0 0.0
    %100 = vmatprep.subr.mxu0 0.0
    %101 = vmatpush1.msra.mxu0 0.0
    %102 = vmatprep.subr.mxu0 0.0
    %103 = vmatpush1.msra.mxu0 %v71
    %104 = vmatprep.subr.mxu0 0.0
    %105 = vmatpush1.msra.mxu0 %v70
    %106 = vmatprep.subr.mxu0 0.0
    %107 = vmatpush1.msra.mxu0 %v69
    %108 = vmatprep.subr.mxu0 0.0
    %109 = vmatpush1.msra.mxu0 %v68
    %110 = vmatprep.subr.mxu0 0.0
    %111 = vmatpush1.msra.mxu0 %v67
    %112 = vmatprep.subr.mxu0 0.0
    %113 = vmatpush1.msra.mxu0 %v66
    %114 = vmatprep.subr.mxu0 0.0
    %115 = vmatpush1.msra.mxu0 %v65
    %116 = vmatprep.subr.mxu0 0.0
    %117 = vmatpush1.msra.mxu0 %v64
    %118 = vmatprep.subr.mxu0 0.0
    %119 = vmatpush2.msra.mxu0 0.0
    %120 = vmatprep.subr.mxu0 0.0
    %121 = vmatpush2.msra.mxu0 0.0
    %122 = vmatprep.subr.mxu0 0.0
    %123 = vmatpush2.msra.mxu0 0.0
    %124 = vmatprep.subr.mxu0 0.0
    %125 = vmatpush2.msra.mxu0 0.0
    %126 = vmatprep.subr.mxu0 0.0
    %127 = vmatpush2.msra.mxu0 0.0
    %128 = vmatprep.subr.mxu0 0.0
    %129 = vmatpush2.msra.mxu0 0.0
    %130 = vmatprep.subr.mxu0 0.0
    %131 = vmatpush2.msra.mxu0 0.0
    %132 = vmatprep.subr.mxu0 0.0
    %133 = vmatpush2.msra.mxu0 0.0
    %134 = vmatprep.subr.mxu0 0.0
    %135 = vmatpush2.msra.mxu0 0.0
    %136 = vmatprep.subr.mxu0 0.0
    %137 = vmatpush2.msra.mxu0 0.0
    %138 = vmatprep.subr.mxu0 0.0
    %139 = vmatpush2.msra.mxu0 0.0
    %140 = vmatprep.subr.mxu0 0.0
    %141 = vmatpush2.msra.mxu0 0.0
    %142 = vmatprep.subr.mxu0 0.0
    %143 = vmatpush2.msra.mxu0 0.0
    %144 = vmatprep.subr.mxu0 0.0
    %145 = vmatpush2.msra.mxu0 0.0
    %146 = vmatprep.subr.mxu0 0.0
    %147 = vmatpush2.msra.mxu0 0.0
    %148 = vmatprep.subr.mxu0 0.0
    %149 = vmatpush2.msra.mxu0 0.0
    %150 = vmatprep.mubr.f32.mxu0 0.0
    %151 = vmatmul.mubr.f32.gmra.mxu0 %v81
    %v152 = vpop.f32.mrf.mxu0
    %v153 = vadd.f32 %v77, %v152
    %v154 = vpop.f32.mrf.mxu0
    %155 = vmatprep.mubr.f32.mxu0 0.0
    %156 = vmatmul.mubr.f32.gmra.mxu0 %v84
    %v157 = vpop.f32.mrf.mxu0
    %v158 = vadd.f32 %v77, %v157
    %v159 = vpop.f32.mrf.mxu0
    %160 = vdwg.mxu0
    %v161 = vld [vmem:[#allocation7] sm:$0xff]
    %v162 = vld [vmem:[#allocation7 + $0x8] sm:$0xff]
    %v163 = vld [vmem:[#allocation7 + $0x10] sm:$0xff]
    %v164 = vld [vmem:[#allocation7 + $0x18] sm:$0xff]
    %v165 = vld [vmem:[%s4] sm:$0x1]
    %v167 = vlaneseq
    %v168 = vshrl.u32 %v167, 7
    %v169 = vsub.s32 0, %v168
    %v170 = vrot.slane %v165, %v169
    %173 = vrot.lane.b32.xlu0 %v153, 96
    %v174 = vpop.permute.xlu0 %173
    %vm175 = vcmask 64512
    %v176 = vsel %vm175, %v153, 0
    %v178 = vsel %vm175, %v174, 0
    %180 = vmatprep.subr.mxu0 0.0
    %181 = vmatpush1.xpose.msra.mxu0 0.0
    %182 = vmatprep.subr.mxu0 0.0
    %183 = vmatpush1.xpose.msra.mxu0 0.0
    %184 = vmatprep.subr.mxu0 0.0
    %185 = vmatpush1.xpose.msra.mxu0 0.0
    %186 = vmatprep.subr.mxu0 0.0
    %187 = vmatpush1.xpose.msra.mxu0 0.0
    %188 = vmatprep.subr.mxu0 0.0
    %189 = vmatpush1.xpose.msra.mxu0 0.0
    %190 = vmatprep.subr.mxu0 0.0
    %191 = vmatpush1.xpose.msra.mxu0 0.0
    %192 = vmatprep.subr.mxu0 0.0
    %193 = vmatpush1.xpose.msra.mxu0 0.0
    %194 = vmatprep.subr.mxu0 0.0
    %195 = vmatpush1.xpose.msra.mxu0 0.0
    %196 = vmatprep.subr.mxu0 0.0
    %197 = vmatpush1.xpose.msra.mxu0 0.0
    %198 = vmatprep.subr.mxu0 0.0
    %199 = vmatpush1.xpose.msra.mxu0 0.0
    %200 = vmatprep.subr.mxu0 0.0
    %201 = vmatpush1.xpose.msra.mxu0 0.0
    %202 = vmatprep.subr.mxu0 0.0
    %203 = vmatpush1.xpose.msra.mxu0 0.0
    %204 = vmatprep.subr.mxu0 0.0
    %205 = vmatpush1.xpose.msra.mxu0 0.0
    %206 = vmatprep.subr.mxu0 0.0
    %207 = vmatpush1.xpose.msra.mxu0 0.0
    %208 = vmatprep.subr.mxu0 0.0
    %209 = vmatpush1.xpose.msra.mxu0 0.0
    %210 = vmatprep.subr.mxu0 0.0
    %211 = vmatpush1.xpose.msra.mxu0 %v178
    %212 = vmatprep.subr.mxu0 0.0
    %213 = vmatpush2.xpose.msra.mxu0 0.0
    %214 = vmatprep.subr.mxu0 0.0
    %215 = vmatpush2.xpose.msra.mxu0 0.0
    %216 = vmatprep.subr.mxu0 0.0
    %217 = vmatpush2.xpose.msra.mxu0 0.0
    %218 = vmatprep.subr.mxu0 0.0
    %219 = vmatpush2.xpose.msra.mxu0 0.0
    %220 = vmatprep.subr.mxu0 0.0
    %221 = vmatpush2.xpose.msra.mxu0 0.0
    %222 = vmatprep.subr.mxu0 0.0
    %223 = vmatpush2.xpose.msra.mxu0 0.0
    %224 = vmatprep.subr.mxu0 0.0
    %225 = vmatpush2.xpose.msra.mxu0 0.0
    %226 = vmatprep.subr.mxu0 0.0
    %227 = vmatpush2.xpose.msra.mxu0 0.0
    %228 = vmatprep.subr.mxu0 0.0
    %229 = vmatpush2.xpose.msra.mxu0 0.0
    %230 = vmatprep.subr.mxu0 0.0
    %231 = vmatpush2.xpose.msra.mxu0 0.0
    %232 = vmatprep.subr.mxu0 0.0
    %233 = vmatpush2.xpose.msra.mxu0 0.0
    %234 = vmatprep.subr.mxu0 0.0
    %235 = vmatpush2.xpose.msra.mxu0 0.0
    %236 = vmatprep.subr.mxu0 0.0
    %237 = vmatpush2.xpose.msra.mxu0 0.0
    %238 = vmatprep.subr.mxu0 0.0
    %239 = vmatpush2.xpose.msra.mxu0 0.0
    %240 = vmatprep.subr.mxu0 0.0
    %241 = vmatpush2.xpose.msra.mxu0 0.0
    %242 = vmatprep.subr.mxu0 0.0
    %243 = vmatpush2.xpose.msra.mxu0 0.0
    %244 = vmatprep.mubr.f32.mxu0 0.0
    %245 = vmatmul.mubr.f32.gmra.mxu0 %v176
    %v246 = vpop.f32.mrf.mxu0
    %v247 = vadd.f32 0.0, %v246
    %v248 = vpop.f32.mrf.mxu0
    %249 = vdwg.mxu0
    %v250 = vsel %vm175, %v247, -inf
    %251 = vmax.xlane.f32.xlu0 %v250
    %v252 = vpop.xlane.xlu0 %251
    %v253 = vsub.f32 %v247, %v252
    %v254 = vmul.f32 %v253, 1.442695
    %v255 = vpow.pop %v254
    %v256 = vsel %vm175, %v255, 0.0
    %257 = vadd.xlane.f32.xlu0 %v256
    %v258 = vpop.xlane.xlu0 %257
    %v259 = vrcp.pop %v258
    %260 = vrot.lane.b32.xlu0 %v153, 64
    %v261 = vpop.permute.xlu0 %260
    %v264 = vsel %vm175, %v255, 0
    %266 = vmatprep.subr.mxu0 0.0
    %267 = vmatpush1.msra.mxu0 0.0
    %268 = vmatprep.subr.mxu0 0.0
    %269 = vmatpush1.msra.mxu0 0.0
    %270 = vmatprep.subr.mxu0 0.0
    %271 = vmatpush1.msra.mxu0 0.0
    %272 = vmatprep.subr.mxu0 0.0
    %273 = vmatpush1.msra.mxu0 0.0
    %274 = vmatprep.subr.mxu0 0.0
    %275 = vmatpush1.msra.mxu0 0.0
    %276 = vmatprep.subr.mxu0 0.0
    %277 = vmatpush1.msra.mxu0 0.0
    %278 = vmatprep.subr.mxu0 0.0
    %279 = vmatpush1.msra.mxu0 0.0
    %280 = vmatprep.subr.mxu0 0.0
    %281 = vmatpush1.msra.mxu0 0.0
    %282 = vmatprep.subr.mxu0 0.0
    %283 = vmatpush1.msra.mxu0 0.0
    %284 = vmatprep.subr.mxu0 0.0
    %285 = vmatpush1.msra.mxu0 0.0
    %286 = vmatprep.subr.mxu0 0.0
    %287 = vmatpush1.msra.mxu0 0.0
    %288 = vmatprep.subr.mxu0 0.0
    %289 = vmatpush1.msra.mxu0 0.0
    %290 = vmatprep.subr.mxu0 0.0
    %291 = vmatpush1.msra.mxu0 0.0
    %292 = vmatprep.subr.mxu0 0.0
    %293 = vmatpush1.msra.mxu0 0.0
    %294 = vmatprep.subr.mxu0 0.0
    %295 = vmatpush1.msra.mxu0 0.0
    %296 = vmatprep.subr.mxu0 0.0
    %297 = vmatpush1.msra.mxu0 %v261
    %298 = vmatprep.subr.mxu0 0.0
    %299 = vmatpush2.msra.mxu0 0.0
    %300 = vmatprep.subr.mxu0 0.0
    %301 = vmatpush2.msra.mxu0 0.0
    %302 = vmatprep.subr.mxu0 0.0
    %303 = vmatpush2.msra.mxu0 0.0
    %304 = vmatprep.subr.mxu0 0.0
    %305 = vmatpush2.msra.mxu0 0.0
    %306 = vmatprep.subr.mxu0 0.0
    %307 = vmatpush2.msra.mxu0 0.0
    %308 = vmatprep.subr.mxu0 0.0
    %309 = vmatpush2.msra.mxu0 0.0
    %310 = vmatprep.subr.mxu0 0.0
    %311 = vmatpush2.msra.mxu0 0.0
    %312 = vmatprep.subr.mxu0 0.0
    %313 = vmatpush2.msra.mxu0 0.0
    %314 = vmatprep.subr.mxu0 0.0
    %315 = vmatpush2.msra.mxu0 0.0
    %316 = vmatprep.subr.mxu0 0.0
    %317 = vmatpush2.msra.mxu0 0.0
    %318 = vmatprep.subr.mxu0 0.0
    %319 = vmatpush2.msra.mxu0 0.0
    %320 = vmatprep.subr.mxu0 0.0
    %321 = vmatpush2.msra.mxu0 0.0
    %322 = vmatprep.subr.mxu0 0.0
    %323 = vmatpush2.msra.mxu0 0.0
    %324 = vmatprep.subr.mxu0 0.0
    %325 = vmatpush2.msra.mxu0 0.0
    %326 = vmatprep.subr.mxu0 0.0
    %327 = vmatpush2.msra.mxu0 0.0
    %328 = vmatprep.subr.mxu0 0.0
    %329 = vmatpush2.msra.mxu0 0.0
    %330 = vmatprep.mubr.f32.mxu0 0.0
    %331 = vmatmul.mubr.f32.gmra.mxu0 %v264
    %v332 = vpop.f32.mrf.mxu0
    %v333 = vadd.f32 0.0, %v332
    %v334 = vpop.f32.mrf.mxu0
    %335 = vdwg.mxu0
    %v336 = vmul.f32 %v333, %v259
    %338 = vrot.lane.b32.xlu0 %v158, 96
    %v339 = vpop.permute.xlu0 %338
    %v340 = vsel %vm175, %v158, 0
    %v342 = vsel %vm175, %v339, 0
    %344 = vmatprep.subr.mxu0 0.0
    %345 = vmatpush1.xpose.msra.mxu0 0.0
    %346 = vmatprep.subr.mxu0 0.0
    %347 = vmatpush1.xpose.msra.mxu0 0.0
    %348 = vmatprep.subr.mxu0 0.0
    %349 = vmatpush1.xpose.msra.mxu0 0.0
    %350 = vmatprep.subr.mxu0 0.0
    %351 = vmatpush1.xpose.msra.mxu0 0.0
    %352 = vmatprep.subr.mxu0 0.0
    %353 = vmatpush1.xpose.msra.mxu0 0.0
    %354 = vmatprep.subr.mxu0 0.0
    %355 = vmatpush1.xpose.msra.mxu0 0.0
    %356 = vmatprep.subr.mxu0 0.0
    %357 = vmatpush1.xpose.msra.mxu0 0.0
    %358 = vmatprep.subr.mxu0 0.0
    %359 = vmatpush1.xpose.msra.mxu0 0.0
    %360 = vmatprep.subr.mxu0 0.0
    %361 = vmatpush1.xpose.msra.mxu0 0.0
    %362 = vmatprep.subr.mxu0 0.0
    %363 = vmatpush1.xpose.msra.mxu0 0.0
    %364 = vmatprep.subr.mxu0 0.0
    %365 = vmatpush1.xpose.msra.mxu0 0.0
    %366 = vmatprep.subr.mxu0 0.0
    %367 = vmatpush1.xpose.msra.mxu0 0.0
    %368 = vmatprep.subr.mxu0 0.0
    %369 = vmatpush1.xpose.msra.mxu0 0.0
    %370 = vmatprep.subr.mxu0 0.0
    %371 = vmatpush1.xpose.msra.mxu0 0.0
    %372 = vmatprep.subr.mxu0 0.0
    %373 = vmatpush1.xpose.msra.mxu0 0.0
    %374 = vmatprep.subr.mxu0 0.0
    %375 = vmatpush1.xpose.msra.mxu0 %v342
    %376 = vmatprep.subr.mxu0 0.0
    %377 = vmatpush2.xpose.msra.mxu0 0.0
    %378 = vmatprep.subr.mxu0 0.0
    %379 = vmatpush2.xpose.msra.mxu0 0.0
    %380 = vmatprep.subr.mxu0 0.0
    %381 = vmatpush2.xpose.msra.mxu0 0.0
    %382 = vmatprep.subr.mxu0 0.0
    %383 = vmatpush2.xpose.msra.mxu0 0.0
    %384 = vmatprep.subr.mxu0 0.0
    %385 = vmatpush2.xpose.msra.mxu0 0.0
    %386 = vmatprep.subr.mxu0 0.0
    %387 = vmatpush2.xpose.msra.mxu0 0.0
    %388 = vmatprep.subr.mxu0 0.0
    %389 = vmatpush2.xpose.msra.mxu0 0.0
    %390 = vmatprep.subr.mxu0 0.0
    %391 = vmatpush2.xpose.msra.mxu0 0.0
    %392 = vmatprep.subr.mxu0 0.0
    %393 = vmatpush2.xpose.msra.mxu0 0.0
    %394 = vmatprep.subr.mxu0 0.0
    %395 = vmatpush2.xpose.msra.mxu0 0.0
    %396 = vmatprep.subr.mxu0 0.0
    %397 = vmatpush2.xpose.msra.mxu0 0.0
    %398 = vmatprep.subr.mxu0 0.0
    %399 = vmatpush2.xpose.msra.mxu0 0.0
    %400 = vmatprep.subr.mxu0 0.0
    %401 = vmatpush2.xpose.msra.mxu0 0.0
    %402 = vmatprep.subr.mxu0 0.0
    %403 = vmatpush2.xpose.msra.mxu0 0.0
    %404 = vmatprep.subr.mxu0 0.0
    %405 = vmatpush2.xpose.msra.mxu0 0.0
    %406 = vmatprep.subr.mxu0 0.0
    %407 = vmatpush2.xpose.msra.mxu0 0.0
    %408 = vmatprep.mubr.f32.mxu0 0.0
    %409 = vmatmul.mubr.f32.gmra.mxu0 %v340
    %v410 = vpop.f32.mrf.mxu0
    %v411 = vadd.f32 0.0, %v410
    %v412 = vpop.f32.mrf.mxu0
    %413 = vdwg.mxu0
    %v414 = vsel %vm175, %v411, -inf
    %415 = vmax.xlane.f32.xlu0 %v414
    %v416 = vpop.xlane.xlu0 %415
    %v417 = vsub.f32 %v411, %v416
    %v418 = vmul.f32 %v417, 1.442695
    %v419 = vpow.pop %v418
    %v420 = vsel %vm175, %v419, 0.0
    %421 = vadd.xlane.f32.xlu0 %v420
    %v422 = vpop.xlane.xlu0 %421
    %v423 = vrcp.pop %v422
    %424 = vrot.lane.b32.xlu0 %v158, 64
    %v425 = vpop.permute.xlu0 %424
    %v428 = vsel %vm175, %v419, 0
    %430 = vmatprep.subr.mxu0 0.0
    %431 = vmatpush1.msra.mxu0 0.0
    %432 = vmatprep.subr.mxu0 0.0
    %433 = vmatpush1.msra.mxu0 0.0
    %434 = vmatprep.subr.mxu0 0.0
    %435 = vmatpush1.msra.mxu0 0.0
    %436 = vmatprep.subr.mxu0 0.0
    %437 = vmatpush1.msra.mxu0 0.0
    %438 = vmatprep.subr.mxu0 0.0
    %439 = vmatpush1.msra.mxu0 0.0
    %440 = vmatprep.subr.mxu0 0.0
    %441 = vmatpush1.msra.mxu0 0.0
    %442 = vmatprep.subr.mxu0 0.0
    %443 = vmatpush1.msra.mxu0 0.0
    %444 = vmatprep.subr.mxu0 0.0
    %445 = vmatpush1.msra.mxu0 0.0
    %446 = vmatprep.subr.mxu0 0.0
    %447 = vmatpush1.msra.mxu0 0.0
    %448 = vmatprep.subr.mxu0 0.0
    %449 = vmatpush1.msra.mxu0 0.0
    %450 = vmatprep.subr.mxu0 0.0
    %451 = vmatpush1.msra.mxu0 0.0
    %452 = vmatprep.subr.mxu0 0.0
    %453 = vmatpush1.msra.mxu0 0.0
    %454 = vmatprep.subr.mxu0 0.0
    %455 = vmatpush1.msra.mxu0 0.0
    %456 = vmatprep.subr.mxu0 0.0
    %457 = vmatpush1.msra.mxu0 0.0
    %458 = vmatprep.subr.mxu0 0.0
    %459 = vmatpush1.msra.mxu0 0.0
    %460 = vmatprep.subr.mxu0 0.0
    %461 = vmatpush1.msra.mxu0 %v425
    %462 = vmatprep.subr.mxu0 0.0
    %463 = vmatpush2.msra.mxu0 0.0
    %464 = vmatprep.subr.mxu0 0.0
    %465 = vmatpush2.msra.mxu0 0.0
    %466 = vmatprep.subr.mxu0 0.0
    %467 = vmatpush2.msra.mxu0 0.0
    %468 = vmatprep.subr.mxu0 0.0
    %469 = vmatpush2.msra.mxu0 0.0
    %470 = vmatprep.subr.mxu0 0.0
    %471 = vmatpush2.msra.mxu0 0.0
    %472 = vmatprep.subr.mxu0 0.0
    %473 = vmatpush2.msra.mxu0 0.0
    %474 = vmatprep.subr.mxu0 0.0
    %475 = vmatpush2.msra.mxu0 0.0
    %476 = vmatprep.subr.mxu0 0.0
    %477 = vmatpush2.msra.mxu0 0.0
    %478 = vmatprep.subr.mxu0 0.0
    %479 = vmatpush2.msra.mxu0 0.0
    %480 = vmatprep.subr.mxu0 0.0
    %481 = vmatpush2.msra.mxu0 0.0
    %482 = vmatprep.subr.mxu0 0.0
    %483 = vmatpush2.msra.mxu0 0.0
    %484 = vmatprep.subr.mxu0 0.0
    %485 = vmatpush2.msra.mxu0 0.0
    %486 = vmatprep.subr.mxu0 0.0
    %487 = vmatpush2.msra.mxu0 0.0
    %488 = vmatprep.subr.mxu0 0.0
    %489 = vmatpush2.msra.mxu0 0.0
    %490 = vmatprep.subr.mxu0 0.0
    %491 = vmatpush2.msra.mxu0 0.0
    %492 = vmatprep.subr.mxu0 0.0
    %493 = vmatpush2.msra.mxu0 0.0
    %494 = vmatprep.mubr.f32.mxu0 0.0
    %495 = vmatmul.mubr.f32.gmra.mxu0 %v428
    %v496 = vpop.f32.mrf.mxu0
    %v497 = vadd.f32 0.0, %v496
    %v498 = vpop.f32.mrf.mxu0
    %499 = vdwg.mxu0
    %v500 = vmul.f32 %v497, %v423
    %v502 = vsel %vm175, %v336, 0
    %v505 = vsel %vm175, %v500, 0
    %507 = vmatprep.subr.mxu0 0.0
    %508 = vmatpush1.msra.mxu0 0.0
    %509 = vmatprep.subr.mxu0 0.0
    %510 = vmatpush1.msra.mxu0 0.0
    %511 = vmatprep.subr.mxu0 0.0
    %512 = vmatpush1.msra.mxu0 0.0
    %513 = vmatprep.subr.mxu0 0.0
    %514 = vmatpush1.msra.mxu0 0.0
    %515 = vmatprep.subr.mxu0 0.0
    %516 = vmatpush1.msra.mxu0 0.0
    %517 = vmatprep.subr.mxu0 0.0
    %518 = vmatpush1.msra.mxu0 0.0
    %519 = vmatprep.subr.mxu0 0.0
    %520 = vmatpush1.msra.mxu0 0.0
    %521 = vmatprep.subr.mxu0 0.0
    %522 = vmatpush1.msra.mxu0 0.0
    %523 = vmatprep.subr.mxu0 0.0
    %524 = vmatpush1.msra.mxu0 0.0
    %525 = vmatprep.subr.mxu0 0.0
    %526 = vmatpush1.msra.mxu0 0.0
    %527 = vmatprep.subr.mxu0 0.0
    %528 = vmatpush1.msra.mxu0 0.0
    %529 = vmatprep.subr.mxu0 0.0
    %530 = vmatpush1.msra.mxu0 0.0
    %531 = vmatprep.subr.mxu0 0.0
    %532 = vmatpush1.msra.mxu0 0.0
    %533 = vmatprep.subr.mxu0 0.0
    %534 = vmatpush1.msra.mxu0 0.0
    %535 = vmatprep.subr.mxu0 0.0
    %536 = vmatpush1.msra.mxu0 0.0
    %537 = vmatprep.subr.mxu0 0.0
    %538 = vmatpush1.msra.mxu0 %v161
    %539 = vmatprep.subr.mxu0 0.0
    %540 = vmatpush2.msra.mxu0 0.0
    %541 = vmatprep.subr.mxu0 0.0
    %542 = vmatpush2.msra.mxu0 0.0
    %543 = vmatprep.subr.mxu0 0.0
    %544 = vmatpush2.msra.mxu0 0.0
    %545 = vmatprep.subr.mxu0 0.0
    %546 = vmatpush2.msra.mxu0 0.0
    %547 = vmatprep.subr.mxu0 0.0
    %548 = vmatpush2.msra.mxu0 0.0
    %549 = vmatprep.subr.mxu0 0.0
    %550 = vmatpush2.msra.mxu0 0.0
    %551 = vmatprep.subr.mxu0 0.0
    %552 = vmatpush2.msra.mxu0 0.0
    %553 = vmatprep.subr.mxu0 0.0
    %554 = vmatpush2.msra.mxu0 0.0
    %555 = vmatprep.subr.mxu0 0.0
    %556 = vmatpush2.msra.mxu0 0.0
    %557 = vmatprep.subr.mxu0 0.0
    %558 = vmatpush2.msra.mxu0 0.0
    %559 = vmatprep.subr.mxu0 0.0
    %560 = vmatpush2.msra.mxu0 0.0
    %561 = vmatprep.subr.mxu0 0.0
    %562 = vmatpush2.msra.mxu0 0.0
    %563 = vmatprep.subr.mxu0 0.0
    %564 = vmatpush2.msra.mxu0 0.0
    %565 = vmatprep.subr.mxu0 0.0
    %566 = vmatpush2.msra.mxu0 0.0
    %567 = vmatprep.subr.mxu0 0.0
    %568 = vmatpush2.msra.mxu0 0.0
    %569 = vmatprep.subr.mxu0 0.0
    %570 = vmatpush2.msra.mxu0 0.0
    %571 = vmatprep.mubr.f32.mxu0 0.0
    %572 = vmatmul.mubr.f32.gmra.mxu0 %v502
    %v573 = vpop.f32.mrf.mxu0
    %v574 = vadd.f32 0.0, %v573
    %v575 = vpop.f32.mrf.mxu0
    %576 = vmatprep.mubr.f32.mxu0 0.0
    %577 = vmatmul.mubr.f32.gmra.mxu0 %v505
    %v578 = vpop.f32.mrf.mxu0
    %v579 = vadd.f32 0.0, %v578
    %v580 = vpop.f32.mrf.mxu0
    %581 = vdwg.mxu0
    %v582 = vadd.f32 %v170, %v574
    %v583 = vadd.f32 %v170, %v579
    %584 = vrot.lane.b32.xlu0 %v153, 120
    %v585 = vpop.permute.xlu0 %584
    %586 = vrot.lane.b32.xlu0 %v153, 88
    %v587 = vpop.permute.xlu0 %586
    %v588 = vsel %vm175, %v585, 0
    %v590 = vsel %vm175, %v587, 0
    %592 = vmatprep.subr.mxu0 0.0
    %593 = vmatpush1.xpose.msra.mxu0 0.0
    %594 = vmatprep.subr.mxu0 0.0
    %595 = vmatpush1.xpose.msra.mxu0 0.0
    %596 = vmatprep.subr.mxu0 0.0
    %597 = vmatpush1.xpose.msra.mxu0 0.0
    %598 = vmatprep.subr.mxu0 0.0
    %599 = vmatpush1.xpose.msra.mxu0 0.0
    %600 = vmatprep.subr.mxu0 0.0
    %601 = vmatpush1.xpose.msra.mxu0 0.0
    %602 = vmatprep.subr.mxu0 0.0
    %603 = vmatpush1.xpose.msra.mxu0 0.0
    %604 = vmatprep.subr.mxu0 0.0
    %605 = vmatpush1.xpose.msra.mxu0 0.0
    %606 = vmatprep.subr.mxu0 0.0
    %607 = vmatpush1.xpose.msra.mxu0 0.0
    %608 = vmatprep.subr.mxu0 0.0
    %609 = vmatpush1.xpose.msra.mxu0 0.0
    %610 = vmatprep.subr.mxu0 0.0
    %611 = vmatpush1.xpose.msra.mxu0 0.0
    %612 = vmatprep.subr.mxu0 0.0
    %613 = vmatpush1.xpose.msra.mxu0 0.0
    %614 = vmatprep.subr.mxu0 0.0
    %615 = vmatpush1.xpose.msra.mxu0 0.0
    %616 = vmatprep.subr.mxu0 0.0
    %617 = vmatpush1.xpose.msra.mxu0 0.0
    %618 = vmatprep.subr.mxu0 0.0
    %619 = vmatpush1.xpose.msra.mxu0 0.0
    %620 = vmatprep.subr.mxu0 0.0
    %621 = vmatpush1.xpose.msra.mxu0 0.0
    %622 = vmatprep.subr.mxu0 0.0
    %623 = vmatpush1.xpose.msra.mxu0 %v590
    %624 = vmatprep.subr.mxu0 0.0
    %625 = vmatpush2.xpose.msra.mxu0 0.0
    %626 = vmatprep.subr.mxu0 0.0
    %627 = vmatpush2.xpose.msra.mxu0 0.0
    %628 = vmatprep.subr.mxu0 0.0
    %629 = vmatpush2.xpose.msra.mxu0 0.0
    %630 = vmatprep.subr.mxu0 0.0
    %631 = vmatpush2.xpose.msra.mxu0 0.0
    %632 = vmatprep.subr.mxu0 0.0
    %633 = vmatpush2.xpose.msra.mxu0 0.0
    %634 = vmatprep.subr.mxu0 0.0
    %635 = vmatpush2.xpose.msra.mxu0 0.0
    %636 = vmatprep.subr.mxu0 0.0
    %637 = vmatpush2.xpose.msra.mxu0 0.0
    %638 = vmatprep.subr.mxu0 0.0
    %639 = vmatpush2.xpose.msra.mxu0 0.0
    %640 = vmatprep.subr.mxu0 0.0
    %641 = vmatpush2.xpose.msra.mxu0 0.0
    %642 = vmatprep.subr.mxu0 0.0
    %643 = vmatpush2.xpose.msra.mxu0 0.0
    %644 = vmatprep.subr.mxu0 0.0
    %645 = vmatpush2.xpose.msra.mxu0 0.0
    %646 = vmatprep.subr.mxu0 0.0
    %647 = vmatpush2.xpose.msra.mxu0 0.0
    %648 = vmatprep.subr.mxu0 0.0
    %649 = vmatpush2.xpose.msra.mxu0 0.0
    %650 = vmatprep.subr.mxu0 0.0
    %651 = vmatpush2.xpose.msra.mxu0 0.0
    %652 = vmatprep.subr.mxu0 0.0
    %653 = vmatpush2.xpose.msra.mxu0 0.0
    %654 = vmatprep.subr.mxu0 0.0
    %655 = vmatpush2.xpose.msra.mxu0 0.0
    %656 = vmatprep.mubr.f32.mxu0 0.0
    %657 = vmatmul.mubr.f32.gmra.mxu0 %v588
    %v658 = vpop.f32.mrf.mxu0
    %v659 = vadd.f32 0.0, %v658
    %v660 = vpop.f32.mrf.mxu0
    %661 = vdwg.mxu0
    %v662 = vsel %vm175, %v659, -inf
    %663 = vmax.xlane.f32.xlu0 %v662
    %v664 = vpop.xlane.xlu0 %663
    %v665 = vsub.f32 %v659, %v664
    %v666 = vmul.f32 %v665, 1.442695
    %v667 = vpow.pop %v666
    %v668 = vsel %vm175, %v667, 0.0
    %669 = vadd.xlane.f32.xlu0 %v668
    %v670 = vpop.xlane.xlu0 %669
    %v671 = vrcp.pop %v670
    %672 = vrot.lane.b32.xlu0 %v153, 56
    %v673 = vpop.permute.xlu0 %672
    %v676 = vsel %vm175, %v667, 0
    %678 = vmatprep.subr.mxu0 0.0
    %679 = vmatpush1.msra.mxu0 0.0
    %680 = vmatprep.subr.mxu0 0.0
    %681 = vmatpush1.msra.mxu0 0.0
    %682 = vmatprep.subr.mxu0 0.0
    %683 = vmatpush1.msra.mxu0 0.0
    %684 = vmatprep.subr.mxu0 0.0
    %685 = vmatpush1.msra.mxu0 0.0
    %686 = vmatprep.subr.mxu0 0.0
    %687 = vmatpush1.msra.mxu0 0.0
    %688 = vmatprep.subr.mxu0 0.0
    %689 = vmatpush1.msra.mxu0 0.0
    %690 = vmatprep.subr.mxu0 0.0
    %691 = vmatpush1.msra.mxu0 0.0
    %692 = vmatprep.subr.mxu0 0.0
    %693 = vmatpush1.msra.mxu0 0.0
    %694 = vmatprep.subr.mxu0 0.0
    %695 = vmatpush1.msra.mxu0 0.0
    %696 = vmatprep.subr.mxu0 0.0
    %697 = vmatpush1.msra.mxu0 0.0
    %698 = vmatprep.subr.mxu0 0.0
    %699 = vmatpush1.msra.mxu0 0.0
    %700 = vmatprep.subr.mxu0 0.0
    %701 = vmatpush1.msra.mxu0 0.0
    %702 = vmatprep.subr.mxu0 0.0
    %703 = vmatpush1.msra.mxu0 0.0
    %704 = vmatprep.subr.mxu0 0.0
    %705 = vmatpush1.msra.mxu0 0.0
    %706 = vmatprep.subr.mxu0 0.0
    %707 = vmatpush1.msra.mxu0 0.0
    %708 = vmatprep.subr.mxu0 0.0
    %709 = vmatpush1.msra.mxu0 %v673
    %710 = vmatprep.subr.mxu0 0.0
    %711 = vmatpush2.msra.mxu0 0.0
    %712 = vmatprep.subr.mxu0 0.0
    %713 = vmatpush2.msra.mxu0 0.0
    %714 = vmatprep.subr.mxu0 0.0
    %715 = vmatpush2.msra.mxu0 0.0
    %716 = vmatprep.subr.mxu0 0.0
    %717 = vmatpush2.msra.mxu0 0.0
    %718 = vmatprep.subr.mxu0 0.0
    %719 = vmatpush2.msra.mxu0 0.0
    %720 = vmatprep.subr.mxu0 0.0
    %721 = vmatpush2.msra.mxu0 0.0
    %722 = vmatprep.subr.mxu0 0.0
    %723 = vmatpush2.msra.mxu0 0.0
    %724 = vmatprep.subr.mxu0 0.0
    %725 = vmatpush2.msra.mxu0 0.0
    %726 = vmatprep.subr.mxu0 0.0
    %727 = vmatpush2.msra.mxu0 0.0
    %728 = vmatprep.subr.mxu0 0.0
    %729 = vmatpush2.msra.mxu0 0.0
    %730 = vmatprep.subr.mxu0 0.0
    %731 = vmatpush2.msra.mxu0 0.0
    %732 = vmatprep.subr.mxu0 0.0
    %733 = vmatpush2.msra.mxu0 0.0
    %734 = vmatprep.subr.mxu0 0.0
    %735 = vmatpush2.msra.mxu0 0.0
    %736 = vmatprep.subr.mxu0 0.0
    %737 = vmatpush2.msra.mxu0 0.0
    %738 = vmatprep.subr.mxu0 0.0
    %739 = vmatpush2.msra.mxu0 0.0
    %740 = vmatprep.subr.mxu0 0.0
    %741 = vmatpush2.msra.mxu0 0.0
    %742 = vmatprep.mubr.f32.mxu0 0.0
    %743 = vmatmul.mubr.f32.gmra.mxu0 %v676
    %v744 = vpop.f32.mrf.mxu0
    %v745 = vadd.f32 0.0, %v744
    %v746 = vpop.f32.mrf.mxu0
    %747 = vdwg.mxu0
    %v748 = vmul.f32 %v745, %v671
    %749 = vrot.lane.b32.xlu0 %v158, 120
    %v750 = vpop.permute.xlu0 %749
    %751 = vrot.lane.b32.xlu0 %v158, 88
    %v752 = vpop.permute.xlu0 %751
    %v753 = vsel %vm175, %v750, 0
    %v755 = vsel %vm175, %v752, 0
    %757 = vmatprep.subr.mxu0 0.0
    %758 = vmatpush1.xpose.msra.mxu0 0.0
    %759 = vmatprep.subr.mxu0 0.0
    %760 = vmatpush1.xpose.msra.mxu0 0.0
    %761 = vmatprep.subr.mxu0 0.0
    %762 = vmatpush1.xpose.msra.mxu0 0.0
    %763 = vmatprep.subr.mxu0 0.0
    %764 = vmatpush1.xpose.msra.mxu0 0.0
    %765 = vmatprep.subr.mxu0 0.0
    %766 = vmatpush1.xpose.msra.mxu0 0.0
    %767 = vmatprep.subr.mxu0 0.0
    %768 = vmatpush1.xpose.msra.mxu0 0.0
    %769 = vmatprep.subr.mxu0 0.0
    %770 = vmatpush1.xpose.msra.mxu0 0.0
    %771 = vmatprep.subr.mxu0 0.0
    %772 = vmatpush1.xpose.msra.mxu0 0.0
    %773 = vmatprep.subr.mxu0 0.0
    %774 = vmatpush1.xpose.msra.mxu0 0.0
    %775 = vmatprep.subr.mxu0 0.0
    %776 = vmatpush1.xpose.msra.mxu0 0.0
    %777 = vmatprep.subr.mxu0 0.0
    %778 = vmatpush1.xpose.msra.mxu0 0.0
    %779 = vmatprep.subr.mxu0 0.0
    %780 = vmatpush1.xpose.msra.mxu0 0.0
    %781 = vmatprep.subr.mxu0 0.0
    %782 = vmatpush1.xpose.msra.mxu0 0.0
    %783 = vmatprep.subr.mxu0 0.0
    %784 = vmatpush1.xpose.msra.mxu0 0.0
    %785 = vmatprep.subr.mxu0 0.0
    %786 = vmatpush1.xpose.msra.mxu0 0.0
    %787 = vmatprep.subr.mxu0 0.0
    %788 = vmatpush1.xpose.msra.mxu0 %v755
    %789 = vmatprep.subr.mxu0 0.0
    %790 = vmatpush2.xpose.msra.mxu0 0.0
    %791 = vmatprep.subr.mxu0 0.0
    %792 = vmatpush2.xpose.msra.mxu0 0.0
    %793 = vmatprep.subr.mxu0 0.0
    %794 = vmatpush2.xpose.msra.mxu0 0.0
    %795 = vmatprep.subr.mxu0 0.0
    %796 = vmatpush2.xpose.msra.mxu0 0.0
    %797 = vmatprep.subr.mxu0 0.0
    %798 = vmatpush2.xpose.msra.mxu0 0.0
    %799 = vmatprep.subr.mxu0 0.0
    %800 = vmatpush2.xpose.msra.mxu0 0.0
    %801 = vmatprep.subr.mxu0 0.0
    %802 = vmatpush2.xpose.msra.mxu0 0.0
    %803 = vmatprep.subr.mxu0 0.0
    %804 = vmatpush2.xpose.msra.mxu0 0.0
    %805 = vmatprep.subr.mxu0 0.0
    %806 = vmatpush2.xpose.msra.mxu0 0.0
    %807 = vmatprep.subr.mxu0 0.0
    %808 = vmatpush2.xpose.msra.mxu0 0.0
    %809 = vmatprep.subr.mxu0 0.0
    %810 = vmatpush2.xpose.msra.mxu0 0.0
    %811 = vmatprep.subr.mxu0 0.0
    %812 = vmatpush2.xpose.msra.mxu0 0.0
    %813 = vmatprep.subr.mxu0 0.0
    %814 = vmatpush2.xpose.msra.mxu0 0.0
    %815 = vmatprep.subr.mxu0 0.0
    %816 = vmatpush2.xpose.msra.mxu0 0.0
    %817 = vmatprep.subr.mxu0 0.0
    %818 = vmatpush2.xpose.msra.mxu0 0.0
    %819 = vmatprep.subr.mxu0 0.0
    %820 = vmatpush2.xpose.msra.mxu0 0.0
    %821 = vmatprep.mubr.f32.mxu0 0.0
    %822 = vmatmul.mubr.f32.gmra.mxu0 %v753
    %v823 = vpop.f32.mrf.mxu0
    %v824 = vadd.f32 0.0, %v823
    %v825 = vpop.f32.mrf.mxu0
    %826 = vdwg.mxu0
    %v827 = vsel %vm175, %v824, -inf
    %828 = vmax.xlane.f32.xlu0 %v827
    %v829 = vpop.xlane.xlu0 %828
    %v830 = vsub.f32 %v824, %v829
    %v831 = vmul.f32 %v830, 1.442695
    %v832 = vpow.pop %v831
    %v833 = vsel %vm175, %v832, 0.0
    %834 = vadd.xlane.f32.xlu0 %v833
    %v835 = vpop.xlane.xlu0 %834
    %v836 = vrcp.pop %v835
    %837 = vrot.lane.b32.xlu0 %v158, 56
    %v838 = vpop.permute.xlu0 %837
    %v841 = vsel %vm175, %v832, 0
    %843 = vmatprep.subr.mxu0 0.0
    %844 = vmatpush1.msra.mxu0 0.0
    %845 = vmatprep.subr.mxu0 0.0
    %846 = vmatpush1.msra.mxu0 0.0
    %847 = vmatprep.subr.mxu0 0.0
    %848 = vmatpush1.msra.mxu0 0.0
    %849 = vmatprep.subr.mxu0 0.0
    %850 = vmatpush1.msra.mxu0 0.0
    %851 = vmatprep.subr.mxu0 0.0
    %852 = vmatpush1.msra.mxu0 0.0
    %853 = vmatprep.subr.mxu0 0.0
    %854 = vmatpush1.msra.mxu0 0.0
    %855 = vmatprep.subr.mxu0 0.0
    %856 = vmatpush1.msra.mxu0 0.0
    %857 = vmatprep.subr.mxu0 0.0
    %858 = vmatpush1.msra.mxu0 0.0
    %859 = vmatprep.subr.mxu0 0.0
    %860 = vmatpush1.msra.mxu0 0.0
    %861 = vmatprep.subr.mxu0 0.0
    %862 = vmatpush1.msra.mxu0 0.0
    %863 = vmatprep.subr.mxu0 0.0
    %864 = vmatpush1.msra.mxu0 0.0
    %865 = vmatprep.subr.mxu0 0.0
    %866 = vmatpush1.msra.mxu0 0.0
    %867 = vmatprep.subr.mxu0 0.0
    %868 = vmatpush1.msra.mxu0 0.0
    %869 = vmatprep.subr.mxu0 0.0
    %870 = vmatpush1.msra.mxu0 0.0
    %871 = vmatprep.subr.mxu0 0.0
    %872 = vmatpush1.msra.mxu0 0.0
    %873 = vmatprep.subr.mxu0 0.0
    %874 = vmatpush1.msra.mxu0 %v838
    %875 = vmatprep.subr.mxu0 0.0
    %876 = vmatpush2.msra.mxu0 0.0
    %877 = vmatprep.subr.mxu0 0.0
    %878 = vmatpush2.msra.mxu0 0.0
    %879 = vmatprep.subr.mxu0 0.0
    %880 = vmatpush2.msra.mxu0 0.0
    %881 = vmatprep.subr.mxu0 0.0
    %882 = vmatpush2.msra.mxu0 0.0
    %883 = vmatprep.subr.mxu0 0.0
    %884 = vmatpush2.msra.mxu0 0.0
    %885 = vmatprep.subr.mxu0 0.0
    %886 = vmatpush2.msra.mxu0 0.0
    %887 = vmatprep.subr.mxu0 0.0
    %888 = vmatpush2.msra.mxu0 0.0
    %889 = vmatprep.subr.mxu0 0.0
    %890 = vmatpush2.msra.mxu0 0.0
    %891 = vmatprep.subr.mxu0 0.0
    %892 = vmatpush2.msra.mxu0 0.0
    %893 = vmatprep.subr.mxu0 0.0
    %894 = vmatpush2.msra.mxu0 0.0
    %895 = vmatprep.subr.mxu0 0.0
    %896 = vmatpush2.msra.mxu0 0.0
    %897 = vmatprep.subr.mxu0 0.0
    %898 = vmatpush2.msra.mxu0 0.0
    %899 = vmatprep.subr.mxu0 0.0
    %900 = vmatpush2.msra.mxu0 0.0
    %901 = vmatprep.subr.mxu0 0.0
    %902 = vmatpush2.msra.mxu0 0.0
    %903 = vmatprep.subr.mxu0 0.0
    %904 = vmatpush2.msra.mxu0 0.0
    %905 = vmatprep.subr.mxu0 0.0
    %906 = vmatpush2.msra.mxu0 0.0
    %907 = vmatprep.mubr.f32.mxu0 0.0
    %908 = vmatmul.mubr.f32.gmra.mxu0 %v841
    %v909 = vpop.f32.mrf.mxu0
    %v910 = vadd.f32 0.0, %v909
    %v911 = vpop.f32.mrf.mxu0
    %912 = vdwg.mxu0
    %v913 = vmul.f32 %v910, %v836
    %v915 = vsel %vm175, %v748, 0
    %v918 = vsel %vm175, %v913, 0
    %920 = vmatprep.subr.mxu0 0.0
    %921 = vmatpush1.msra.mxu0 0.0
    %922 = vmatprep.subr.mxu0 0.0
    %923 = vmatpush1.msra.mxu0 0.0
    %924 = vmatprep.subr.mxu0 0.0
    %925 = vmatpush1.msra.mxu0 0.0
    %926 = vmatprep.subr.mxu0 0.0
    %927 = vmatpush1.msra.mxu0 0.0
    %928 = vmatprep.subr.mxu0 0.0
    %929 = vmatpush1.msra.mxu0 0.0
    %930 = vmatprep.subr.mxu0 0.0
    %931 = vmatpush1.msra.mxu0 0.0
    %932 = vmatprep.subr.mxu0 0.0
    %933 = vmatpush1.msra.mxu0 0.0
    %934 = vmatprep.subr.mxu0 0.0
    %935 = vmatpush1.msra.mxu0 0.0
    %936 = vmatprep.subr.mxu0 0.0
    %937 = vmatpush1.msra.mxu0 0.0
    %938 = vmatprep.subr.mxu0 0.0
    %939 = vmatpush1.msra.mxu0 0.0
    %940 = vmatprep.subr.mxu0 0.0
    %941 = vmatpush1.msra.mxu0 0.0
    %942 = vmatprep.subr.mxu0 0.0
    %943 = vmatpush1.msra.mxu0 0.0
    %944 = vmatprep.subr.mxu0 0.0
    %945 = vmatpush1.msra.mxu0 0.0
    %946 = vmatprep.subr.mxu0 0.0
    %947 = vmatpush1.msra.mxu0 0.0
    %948 = vmatprep.subr.mxu0 0.0
    %949 = vmatpush1.msra.mxu0 0.0
    %950 = vmatprep.subr.mxu0 0.0
    %951 = vmatpush1.msra.mxu0 %v162
    %952 = vmatprep.subr.mxu0 0.0
    %953 = vmatpush2.msra.mxu0 0.0
    %954 = vmatprep.subr.mxu0 0.0
    %955 = vmatpush2.msra.mxu0 0.0
    %956 = vmatprep.subr.mxu0 0.0
    %957 = vmatpush2.msra.mxu0 0.0
    %958 = vmatprep.subr.mxu0 0.0
    %959 = vmatpush2.msra.mxu0 0.0
    %960 = vmatprep.subr.mxu0 0.0
    %961 = vmatpush2.msra.mxu0 0.0
    %962 = vmatprep.subr.mxu0 0.0
    %963 = vmatpush2.msra.mxu0 0.0
    %964 = vmatprep.subr.mxu0 0.0
    %965 = vmatpush2.msra.mxu0 0.0
    %966 = vmatprep.subr.mxu0 0.0
    %967 = vmatpush2.msra.mxu0 0.0
    %968 = vmatprep.subr.mxu0 0.0
    %969 = vmatpush2.msra.mxu0 0.0
    %970 = vmatprep.subr.mxu0 0.0
    %971 = vmatpush2.msra.mxu0 0.0
    %972 = vmatprep.subr.mxu0 0.0
    %973 = vmatpush2.msra.mxu0 0.0
    %974 = vmatprep.subr.mxu0 0.0
    %975 = vmatpush2.msra.mxu0 0.0
    %976 = vmatprep.subr.mxu0 0.0
    %977 = vmatpush2.msra.mxu0 0.0
    %978 = vmatprep.subr.mxu0 0.0
    %979 = vmatpush2.msra.mxu0 0.0
    %980 = vmatprep.subr.mxu0 0.0
    %981 = vmatpush2.msra.mxu0 0.0
    %982 = vmatprep.subr.mxu0 0.0
    %983 = vmatpush2.msra.mxu0 0.0
    %984 = vmatprep.mubr.f32.mxu0 0.0
    %985 = vmatmul.mubr.f32.gmra.mxu0 %v915
    %v986 = vpop.f32.mrf.mxu0
    %v987 = vadd.f32 0.0, %v986
    %v988 = vpop.f32.mrf.mxu0
    %989 = vmatprep.mubr.f32.mxu0 0.0
    %990 = vmatmul.mubr.f32.gmra.mxu0 %v918
    %v991 = vpop.f32.mrf.mxu0
    %v992 = vadd.f32 0.0, %v991
    %v993 = vpop.f32.mrf.mxu0
    %994 = vdwg.mxu0
    %v995 = vadd.f32 %v582, %v987
    %v996 = vadd.f32 %v583, %v992
    %997 = vrot.lane.b32.xlu0 %v153, 112
    %v998 = vpop.permute.xlu0 %997
    %999 = vrot.lane.b32.xlu0 %v153, 80
    %v1000 = vpop.permute.xlu0 %999
    %v1001 = vsel %vm175, %v998, 0
    %v1003 = vsel %vm175, %v1000, 0
    %1005 = vmatprep.subr.mxu0 0.0
    %1006 = vmatpush1.xpose.msra.mxu0 0.0
    %1007 = vmatprep.subr.mxu0 0.0
    %1008 = vmatpush1.xpose.msra.mxu0 0.0
    %1009 = vmatprep.subr.mxu0 0.0
    %1010 = vmatpush1.xpose.msra.mxu0 0.0
    %1011 = vmatprep.subr.mxu0 0.0
    %1012 = vmatpush1.xpose.msra.mxu0 0.0
    %1013 = vmatprep.subr.mxu0 0.0
    %1014 = vmatpush1.xpose.msra.mxu0 0.0
    %1015 = vmatprep.subr.mxu0 0.0
    %1016 = vmatpush1.xpose.msra.mxu0 0.0
    %1017 = vmatprep.subr.mxu0 0.0
    %1018 = vmatpush1.xpose.msra.mxu0 0.0
    %1019 = vmatprep.subr.mxu0 0.0
    %1020 = vmatpush1.xpose.msra.mxu0 0.0
    %1021 = vmatprep.subr.mxu0 0.0
    %1022 = vmatpush1.xpose.msra.mxu0 0.0
    %1023 = vmatprep.subr.mxu0 0.0
    %1024 = vmatpush1.xpose.msra.mxu0 0.0
    %1025 = vmatprep.subr.mxu0 0.0
    %1026 = vmatpush1.xpose.msra.mxu0 0.0
    %1027 = vmatprep.subr.mxu0 0.0
    %1028 = vmatpush1.xpose.msra.mxu0 0.0
    %1029 = vmatprep.subr.mxu0 0.0
    %1030 = vmatpush1.xpose.msra.mxu0 0.0
    %1031 = vmatprep.subr.mxu0 0.0
    %1032 = vmatpush1.xpose.msra.mxu0 0.0
    %1033 = vmatprep.subr.mxu0 0.0
    %1034 = vmatpush1.xpose.msra.mxu0 0.0
    %1035 = vmatprep.subr.mxu0 0.0
    %1036 = vmatpush1.xpose.msra.mxu0 %v1003
    %1037 = vmatprep.subr.mxu0 0.0
    %1038 = vmatpush2.xpose.msra.mxu0 0.0
    %1039 = vmatprep.subr.mxu0 0.0
    %1040 = vmatpush2.xpose.msra.mxu0 0.0
    %1041 = vmatprep.subr.mxu0 0.0
    %1042 = vmatpush2.xpose.msra.mxu0 0.0
    %1043 = vmatprep.subr.mxu0 0.0
    %1044 = vmatpush2.xpose.msra.mxu0 0.0
    %1045 = vmatprep.subr.mxu0 0.0
    %1046 = vmatpush2.xpose.msra.mxu0 0.0
    %1047 = vmatprep.subr.mxu0 0.0
    %1048 = vmatpush2.xpose.msra.mxu0 0.0
    %1049 = vmatprep.subr.mxu0 0.0
    %1050 = vmatpush2.xpose.msra.mxu0 0.0
    %1051 = vmatprep.subr.mxu0 0.0
    %1052 = vmatpush2.xpose.msra.mxu0 0.0
    %1053 = vmatprep.subr.mxu0 0.0
    %1054 = vmatpush2.xpose.msra.mxu0 0.0
    %1055 = vmatprep.subr.mxu0 0.0
    %1056 = vmatpush2.xpose.msra.mxu0 0.0
    %1057 = vmatprep.subr.mxu0 0.0
    %1058 = vmatpush2.xpose.msra.mxu0 0.0
    %1059 = vmatprep.subr.mxu0 0.0
    %1060 = vmatpush2.xpose.msra.mxu0 0.0
    %1061 = vmatprep.subr.mxu0 0.0
    %1062 = vmatpush2.xpose.msra.mxu0 0.0
    %1063 = vmatprep.subr.mxu0 0.0
    %1064 = vmatpush2.xpose.msra.mxu0 0.0
    %1065 = vmatprep.subr.mxu0 0.0
    %1066 = vmatpush2.xpose.msra.mxu0 0.0
    %1067 = vmatprep.subr.mxu0 0.0
    %1068 = vmatpush2.xpose.msra.mxu0 0.0
    %1069 = vmatprep.mubr.f32.mxu0 0.0
    %1070 = vmatmul.mubr.f32.gmra.mxu0 %v1001
    %v1071 = vpop.f32.mrf.mxu0
    %v1072 = vadd.f32 0.0, %v1071
    %v1073 = vpop.f32.mrf.mxu0
    %1074 = vdwg.mxu0
    %v1075 = vsel %vm175, %v1072, -inf
    %1076 = vmax.xlane.f32.xlu0 %v1075
    %v1077 = vpop.xlane.xlu0 %1076
    %v1078 = vsub.f32 %v1072, %v1077
    %v1079 = vmul.f32 %v1078, 1.442695
    %v1080 = vpow.pop %v1079
    %v1081 = vsel %vm175, %v1080, 0.0
    %1082 = vadd.xlane.f32.xlu0 %v1081
    %v1083 = vpop.xlane.xlu0 %1082
    %v1084 = vrcp.pop %v1083
    %1085 = vrot.lane.b32.xlu0 %v153, 48
    %v1086 = vpop.permute.xlu0 %1085
    %v1089 = vsel %vm175, %v1080, 0
    %1091 = vmatprep.subr.mxu0 0.0
    %1092 = vmatpush1.msra.mxu0 0.0
    %1093 = vmatprep.subr.mxu0 0.0
    %1094 = vmatpush1.msra.mxu0 0.0
    %1095 = vmatprep.subr.mxu0 0.0
    %1096 = vmatpush1.msra.mxu0 0.0
    %1097 = vmatprep.subr.mxu0 0.0
    %1098 = vmatpush1.msra.mxu0 0.0
    %1099 = vmatprep.subr.mxu0 0.0
    %1100 = vmatpush1.msra.mxu0 0.0
    %1101 = vmatprep.subr.mxu0 0.0
    %1102 = vmatpush1.msra.mxu0 0.0
    %1103 = vmatprep.subr.mxu0 0.0
    %1104 = vmatpush1.msra.mxu0 0.0
    %1105 = vmatprep.subr.mxu0 0.0
    %1106 = vmatpush1.msra.mxu0 0.0
    %1107 = vmatprep.subr.mxu0 0.0
    %1108 = vmatpush1.msra.mxu0 0.0
    %1109 = vmatprep.subr.mxu0 0.0
    %1110 = vmatpush1.msra.mxu0 0.0
    %1111 = vmatprep.subr.mxu0 0.0
    %1112 = vmatpush1.msra.mxu0 0.0
    %1113 = vmatprep.subr.mxu0 0.0
    %1114 = vmatpush1.msra.mxu0 0.0
    %1115 = vmatprep.subr.mxu0 0.0
    %1116 = vmatpush1.msra.mxu0 0.0
    %1117 = vmatprep.subr.mxu0 0.0
    %1118 = vmatpush1.msra.mxu0 0.0
    %1119 = vmatprep.subr.mxu0 0.0
    %1120 = vmatpush1.msra.mxu0 0.0
    %1121 = vmatprep.subr.mxu0 0.0
    %1122 = vmatpush1.msra.mxu0 %v1086
    %1123 = vmatprep.subr.mxu0 0.0
    %1124 = vmatpush2.msra.mxu0 0.0
    %1125 = vmatprep.subr.mxu0 0.0
    %1126 = vmatpush2.msra.mxu0 0.0
    %1127 = vmatprep.subr.mxu0 0.0
    %1128 = vmatpush2.msra.mxu0 0.0
    %1129 = vmatprep.subr.mxu0 0.0
    %1130 = vmatpush2.msra.mxu0 0.0
    %1131 = vmatprep.subr.mxu0 0.0
    %1132 = vmatpush2.msra.mxu0 0.0
    %1133 = vmatprep.subr.mxu0 0.0
    %1134 = vmatpush2.msra.mxu0 0.0
    %1135 = vmatprep.subr.mxu0 0.0
    %1136 = vmatpush2.msra.mxu0 0.0
    %1137 = vmatprep.subr.mxu0 0.0
    %1138 = vmatpush2.msra.mxu0 0.0
    %1139 = vmatprep.subr.mxu0 0.0
    %1140 = vmatpush2.msra.mxu0 0.0
    %1141 = vmatprep.subr.mxu0 0.0
    %1142 = vmatpush2.msra.mxu0 0.0
    %1143 = vmatprep.subr.mxu0 0.0
    %1144 = vmatpush2.msra.mxu0 0.0
    %1145 = vmatprep.subr.mxu0 0.0
    %1146 = vmatpush2.msra.mxu0 0.0
    %1147 = vmatprep.subr.mxu0 0.0
    %1148 = vmatpush2.msra.mxu0 0.0
    %1149 = vmatprep.subr.mxu0 0.0
    %1150 = vmatpush2.msra.mxu0 0.0
    %1151 = vmatprep.subr.mxu0 0.0
    %1152 = vmatpush2.msra.mxu0 0.0
    %1153 = vmatprep.subr.mxu0 0.0
    %1154 = vmatpush2.msra.mxu0 0.0
    %1155 = vmatprep.mubr.f32.mxu0 0.0
    %1156 = vmatmul.mubr.f32.gmra.mxu0 %v1089
    %v1157 = vpop.f32.mrf.mxu0
    %v1158 = vadd.f32 0.0, %v1157
    %v1159 = vpop.f32.mrf.mxu0
    %1160 = vdwg.mxu0
    %v1161 = vmul.f32 %v1158, %v1084
    %1162 = vrot.lane.b32.xlu0 %v158, 112
    %v1163 = vpop.permute.xlu0 %1162
    %1164 = vrot.lane.b32.xlu0 %v158, 80
    %v1165 = vpop.permute.xlu0 %1164
    %v1166 = vsel %vm175, %v1163, 0
    %v1168 = vsel %vm175, %v1165, 0
    %1170 = vmatprep.subr.mxu0 0.0
    %1171 = vmatpush1.xpose.msra.mxu0 0.0
    %1172 = vmatprep.subr.mxu0 0.0
    %1173 = vmatpush1.xpose.msra.mxu0 0.0
    %1174 = vmatprep.subr.mxu0 0.0
    %1175 = vmatpush1.xpose.msra.mxu0 0.0
    %1176 = vmatprep.subr.mxu0 0.0
    %1177 = vmatpush1.xpose.msra.mxu0 0.0
    %1178 = vmatprep.subr.mxu0 0.0
    %1179 = vmatpush1.xpose.msra.mxu0 0.0
    %1180 = vmatprep.subr.mxu0 0.0
    %1181 = vmatpush1.xpose.msra.mxu0 0.0
    %1182 = vmatprep.subr.mxu0 0.0
    %1183 = vmatpush1.xpose.msra.mxu0 0.0
    %1184 = vmatprep.subr.mxu0 0.0
    %1185 = vmatpush1.xpose.msra.mxu0 0.0
    %1186 = vmatprep.subr.mxu0 0.0
    %1187 = vmatpush1.xpose.msra.mxu0 0.0
    %1188 = vmatprep.subr.mxu0 0.0
    %1189 = vmatpush1.xpose.msra.mxu0 0.0
    %1190 = vmatprep.subr.mxu0 0.0
    %1191 = vmatpush1.xpose.msra.mxu0 0.0
    %1192 = vmatprep.subr.mxu0 0.0
    %1193 = vmatpush1.xpose.msra.mxu0 0.0
    %1194 = vmatprep.subr.mxu0 0.0
    %1195 = vmatpush1.xpose.msra.mxu0 0.0
    %1196 = vmatprep.subr.mxu0 0.0
    %1197 = vmatpush1.xpose.msra.mxu0 0.0
    %1198 = vmatprep.subr.mxu0 0.0
    %1199 = vmatpush1.xpose.msra.mxu0 0.0
    %1200 = vmatprep.subr.mxu0 0.0
    %1201 = vmatpush1.xpose.msra.mxu0 %v1168
    %1202 = vmatprep.subr.mxu0 0.0
    %1203 = vmatpush2.xpose.msra.mxu0 0.0
    %1204 = vmatprep.subr.mxu0 0.0
    %1205 = vmatpush2.xpose.msra.mxu0 0.0
    %1206 = vmatprep.subr.mxu0 0.0
    %1207 = vmatpush2.xpose.msra.mxu0 0.0
    %1208 = vmatprep.subr.mxu0 0.0
    %1209 = vmatpush2.xpose.msra.mxu0 0.0
    %1210 = vmatprep.subr.mxu0 0.0
    %1211 = vmatpush2.xpose.msra.mxu0 0.0
    %1212 = vmatprep.subr.mxu0 0.0
    %1213 = vmatpush2.xpose.msra.mxu0 0.0
    %1214 = vmatprep.subr.mxu0 0.0
    %1215 = vmatpush2.xpose.msra.mxu0 0.0
    %1216 = vmatprep.subr.mxu0 0.0
    %1217 = vmatpush2.xpose.msra.mxu0 0.0
    %1218 = vmatprep.subr.mxu0 0.0
    %1219 = vmatpush2.xpose.msra.mxu0 0.0
    %1220 = vmatprep.subr.mxu0 0.0
    %1221 = vmatpush2.xpose.msra.mxu0 0.0
    %1222 = vmatprep.subr.mxu0 0.0
    %1223 = vmatpush2.xpose.msra.mxu0 0.0
    %1224 = vmatprep.subr.mxu0 0.0
    %1225 = vmatpush2.xpose.msra.mxu0 0.0
    %1226 = vmatprep.subr.mxu0 0.0
    %1227 = vmatpush2.xpose.msra.mxu0 0.0
    %1228 = vmatprep.subr.mxu0 0.0
    %1229 = vmatpush2.xpose.msra.mxu0 0.0
    %1230 = vmatprep.subr.mxu0 0.0
    %1231 = vmatpush2.xpose.msra.mxu0 0.0
    %1232 = vmatprep.subr.mxu0 0.0
    %1233 = vmatpush2.xpose.msra.mxu0 0.0
    %1234 = vmatprep.mubr.f32.mxu0 0.0
    %1235 = vmatmul.mubr.f32.gmra.mxu0 %v1166
    %v1236 = vpop.f32.mrf.mxu0
    %v1237 = vadd.f32 0.0, %v1236
    %v1238 = vpop.f32.mrf.mxu0
    %1239 = vdwg.mxu0
    %v1240 = vsel %vm175, %v1237, -inf
    %1241 = vmax.xlane.f32.xlu0 %v1240
    %v1242 = vpop.xlane.xlu0 %1241
    %v1243 = vsub.f32 %v1237, %v1242
    %v1244 = vmul.f32 %v1243, 1.442695
    %v1245 = vpow.pop %v1244
    %v1246 = vsel %vm175, %v1245, 0.0
    %1247 = vadd.xlane.f32.xlu0 %v1246
    %v1248 = vpop.xlane.xlu0 %1247
    %v1249 = vrcp.pop %v1248
    %1250 = vrot.lane.b32.xlu0 %v158, 48
    %v1251 = vpop.permute.xlu0 %1250
    %v1254 = vsel %vm175, %v1245, 0
    %1256 = vmatprep.subr.mxu0 0.0
    %1257 = vmatpush1.msra.mxu0 0.0
    %1258 = vmatprep.subr.mxu0 0.0
    %1259 = vmatpush1.msra.mxu0 0.0
    %1260 = vmatprep.subr.mxu0 0.0
    %1261 = vmatpush1.msra.mxu0 0.0
    %1262 = vmatprep.subr.mxu0 0.0
    %1263 = vmatpush1.msra.mxu0 0.0
    %1264 = vmatprep.subr.mxu0 0.0
    %1265 = vmatpush1.msra.mxu0 0.0
    %1266 = vmatprep.subr.mxu0 0.0
    %1267 = vmatpush1.msra.mxu0 0.0
    %1268 = vmatprep.subr.mxu0 0.0
    %1269 = vmatpush1.msra.mxu0 0.0
    %1270 = vmatprep.subr.mxu0 0.0
    %1271 = vmatpush1.msra.mxu0 0.0
    %1272 = vmatprep.subr.mxu0 0.0
    %1273 = vmatpush1.msra.mxu0 0.0
    %1274 = vmatprep.subr.mxu0 0.0
    %1275 = vmatpush1.msra.mxu0 0.0
    %1276 = vmatprep.subr.mxu0 0.0
    %1277 = vmatpush1.msra.mxu0 0.0
    %1278 = vmatprep.subr.mxu0 0.0
    %1279 = vmatpush1.msra.mxu0 0.0
    %1280 = vmatprep.subr.mxu0 0.0
    %1281 = vmatpush1.msra.mxu0 0.0
    %1282 = vmatprep.subr.mxu0 0.0
    %1283 = vmatpush1.msra.mxu0 0.0
    %1284 = vmatprep.subr.mxu0 0.0
    %1285 = vmatpush1.msra.mxu0 0.0
    %1286 = vmatprep.subr.mxu0 0.0
    %1287 = vmatpush1.msra.mxu0 %v1251
    %1288 = vmatprep.subr.mxu0 0.0
    %1289 = vmatpush2.msra.mxu0 0.0
    %1290 = vmatprep.subr.mxu0 0.0
    %1291 = vmatpush2.msra.mxu0 0.0
    %1292 = vmatprep.subr.mxu0 0.0
    %1293 = vmatpush2.msra.mxu0 0.0
    %1294 = vmatprep.subr.mxu0 0.0
    %1295 = vmatpush2.msra.mxu0 0.0
    %1296 = vmatprep.subr.mxu0 0.0
    %1297 = vmatpush2.msra.mxu0 0.0
    %1298 = vmatprep.subr.mxu0 0.0
    %1299 = vmatpush2.msra.mxu0 0.0
    %1300 = vmatprep.subr.mxu0 0.0
    %1301 = vmatpush2.msra.mxu0 0.0
    %1302 = vmatprep.subr.mxu0 0.0
    %1303 = vmatpush2.msra.mxu0 0.0
    %1304 = vmatprep.subr.mxu0 0.0
    %1305 = vmatpush2.msra.mxu0 0.0
    %1306 = vmatprep.subr.mxu0 0.0
    %1307 = vmatpush2.msra.mxu0 0.0
    %1308 = vmatprep.subr.mxu0 0.0
    %1309 = vmatpush2.msra.mxu0 0.0
    %1310 = vmatprep.subr.mxu0 0.0
    %1311 = vmatpush2.msra.mxu0 0.0
    %1312 = vmatprep.subr.mxu0 0.0
    %1313 = vmatpush2.msra.mxu0 0.0
    %1314 = vmatprep.subr.mxu0 0.0
    %1315 = vmatpush2.msra.mxu0 0.0
    %1316 = vmatprep.subr.mxu0 0.0
    %1317 = vmatpush2.msra.mxu0 0.0
    %1318 = vmatprep.subr.mxu0 0.0
    %1319 = vmatpush2.msra.mxu0 0.0
    %1320 = vmatprep.mubr.f32.mxu0 0.0
    %1321 = vmatmul.mubr.f32.gmra.mxu0 %v1254
    %v1322 = vpop.f32.mrf.mxu0
    %v1323 = vadd.f32 0.0, %v1322
    %v1324 = vpop.f32.mrf.mxu0
    %1325 = vdwg.mxu0
    %v1326 = vmul.f32 %v1323, %v1249
    %v1328 = vsel %vm175, %v1161, 0
    %v1331 = vsel %vm175, %v1326, 0
    %1333 = vmatprep.subr.mxu0 0.0
    %1334 = vmatpush1.msra.mxu0 0.0
    %1335 = vmatprep.subr.mxu0 0.0
    %1336 = vmatpush1.msra.mxu0 0.0
    %1337 = vmatprep.subr.mxu0 0.0
    %1338 = vmatpush1.msra.mxu0 0.0
    %1339 = vmatprep.subr.mxu0 0.0
    %1340 = vmatpush1.msra.mxu0 0.0
    %1341 = vmatprep.subr.mxu0 0.0
    %1342 = vmatpush1.msra.mxu0 0.0
    %1343 = vmatprep.subr.mxu0 0.0
    %1344 = vmatpush1.msra.mxu0 0.0
    %1345 = vmatprep.subr.mxu0 0.0
    %1346 = vmatpush1.msra.mxu0 0.0
    %1347 = vmatprep.subr.mxu0 0.0
    %1348 = vmatpush1.msra.mxu0 0.0
    %1349 = vmatprep.subr.mxu0 0.0
    %1350 = vmatpush1.msra.mxu0 0.0
    %1351 = vmatprep.subr.mxu0 0.0
    %1352 = vmatpush1.msra.mxu0 0.0
    %1353 = vmatprep.subr.mxu0 0.0
    %1354 = vmatpush1.msra.mxu0 0.0
    %1355 = vmatprep.subr.mxu0 0.0
    %1356 = vmatpush1.msra.mxu0 0.0
    %1357 = vmatprep.subr.mxu0 0.0
    %1358 = vmatpush1.msra.mxu0 0.0
    %1359 = vmatprep.subr.mxu0 0.0
    %1360 = vmatpush1.msra.mxu0 0.0
    %1361 = vmatprep.subr.mxu0 0.0
    %1362 = vmatpush1.msra.mxu0 0.0
    %1363 = vmatprep.subr.mxu0 0.0
    %1364 = vmatpush1.msra.mxu0 %v163
    %1365 = vmatprep.subr.mxu0 0.0
    %1366 = vmatpush2.msra.mxu0 0.0
    %1367 = vmatprep.subr.mxu0 0.0
    %1368 = vmatpush2.msra.mxu0 0.0
    %1369 = vmatprep.subr.mxu0 0.0
    %1370 = vmatpush2.msra.mxu0 0.0
    %1371 = vmatprep.subr.mxu0 0.0
    %1372 = vmatpush2.msra.mxu0 0.0
    %1373 = vmatprep.subr.mxu0 0.0
    %1374 = vmatpush2.msra.mxu0 0.0
    %1375 = vmatprep.subr.mxu0 0.0
    %1376 = vmatpush2.msra.mxu0 0.0
    %1377 = vmatprep.subr.mxu0 0.0
    %1378 = vmatpush2.msra.mxu0 0.0
    %1379 = vmatprep.subr.mxu0 0.0
    %1380 = vmatpush2.msra.mxu0 0.0
    %1381 = vmatprep.subr.mxu0 0.0
    %1382 = vmatpush2.msra.mxu0 0.0
    %1383 = vmatprep.subr.mxu0 0.0
    %1384 = vmatpush2.msra.mxu0 0.0
    %1385 = vmatprep.subr.mxu0 0.0
    %1386 = vmatpush2.msra.mxu0 0.0
    %1387 = vmatprep.subr.mxu0 0.0
    %1388 = vmatpush2.msra.mxu0 0.0
    %1389 = vmatprep.subr.mxu0 0.0
    %1390 = vmatpush2.msra.mxu0 0.0
    %1391 = vmatprep.subr.mxu0 0.0
    %1392 = vmatpush2.msra.mxu0 0.0
    %1393 = vmatprep.subr.mxu0 0.0
    %1394 = vmatpush2.msra.mxu0 0.0
    %1395 = vmatprep.subr.mxu0 0.0
    %1396 = vmatpush2.msra.mxu0 0.0
    %1397 = vmatprep.mubr.f32.mxu0 0.0
    %1398 = vmatmul.mubr.f32.gmra.mxu0 %v1328
    %v1399 = vpop.f32.mrf.mxu0
    %v1400 = vadd.f32 0.0, %v1399
    %v1401 = vpop.f32.mrf.mxu0
    %1402 = vmatprep.mubr.f32.mxu0 0.0
    %1403 = vmatmul.mubr.f32.gmra.mxu0 %v1331
    %v1404 = vpop.f32.mrf.mxu0
    %v1405 = vadd.f32 0.0, %v1404
    %v1406 = vpop.f32.mrf.mxu0
    %1407 = vdwg.mxu0
    %v1408 = vadd.f32 %v995, %v1400
    %v1409 = vadd.f32 %v996, %v1405
    %1410 = vrot.lane.b32.xlu0 %v153, 104
    %v1411 = vpop.permute.xlu0 %1410
    %1412 = vrot.lane.b32.xlu0 %v153, 72
    %v1413 = vpop.permute.xlu0 %1412
    %v1414 = vsel %vm175, %v1411, 0
    %v1416 = vsel %vm175, %v1413, 0
    %1418 = vmatprep.subr.mxu0 0.0
    %1419 = vmatpush1.xpose.msra.mxu0 0.0
    %1420 = vmatprep.subr.mxu0 0.0
    %1421 = vmatpush1.xpose.msra.mxu0 0.0
    %1422 = vmatprep.subr.mxu0 0.0
    %1423 = vmatpush1.xpose.msra.mxu0 0.0
    %1424 = vmatprep.subr.mxu0 0.0
    %1425 = vmatpush1.xpose.msra.mxu0 0.0
    %1426 = vmatprep.subr.mxu0 0.0
    %1427 = vmatpush1.xpose.msra.mxu0 0.0
    %1428 = vmatprep.subr.mxu0 0.0
    %1429 = vmatpush1.xpose.msra.mxu0 0.0
    %1430 = vmatprep.subr.mxu0 0.0
    %1431 = vmatpush1.xpose.msra.mxu0 0.0
    %1432 = vmatprep.subr.mxu0 0.0
    %1433 = vmatpush1.xpose.msra.mxu0 0.0
    %1434 = vmatprep.subr.mxu0 0.0
    %1435 = vmatpush1.xpose.msra.mxu0 0.0
    %1436 = vmatprep.subr.mxu0 0.0
    %1437 = vmatpush1.xpose.msra.mxu0 0.0
    %1438 = vmatprep.subr.mxu0 0.0
    %1439 = vmatpush1.xpose.msra.mxu0 0.0
    %1440 = vmatprep.subr.mxu0 0.0
    %1441 = vmatpush1.xpose.msra.mxu0 0.0
    %1442 = vmatprep.subr.mxu0 0.0
    %1443 = vmatpush1.xpose.msra.mxu0 0.0
    %1444 = vmatprep.subr.mxu0 0.0
    %1445 = vmatpush1.xpose.msra.mxu0 0.0
    %1446 = vmatprep.subr.mxu0 0.0
    %1447 = vmatpush1.xpose.msra.mxu0 0.0
    %1448 = vmatprep.subr.mxu0 0.0
    %1449 = vmatpush1.xpose.msra.mxu0 %v1416
    %1450 = vmatprep.subr.mxu0 0.0
    %1451 = vmatpush2.xpose.msra.mxu0 0.0
    %1452 = vmatprep.subr.mxu0 0.0
    %1453 = vmatpush2.xpose.msra.mxu0 0.0
    %1454 = vmatprep.subr.mxu0 0.0
    %1455 = vmatpush2.xpose.msra.mxu0 0.0
    %1456 = vmatprep.subr.mxu0 0.0
    %1457 = vmatpush2.xpose.msra.mxu0 0.0
    %1458 = vmatprep.subr.mxu0 0.0
    %1459 = vmatpush2.xpose.msra.mxu0 0.0
    %1460 = vmatprep.subr.mxu0 0.0
    %1461 = vmatpush2.xpose.msra.mxu0 0.0
    %1462 = vmatprep.subr.mxu0 0.0
    %1463 = vmatpush2.xpose.msra.mxu0 0.0
    %1464 = vmatprep.subr.mxu0 0.0
    %1465 = vmatpush2.xpose.msra.mxu0 0.0
    %1466 = vmatprep.subr.mxu0 0.0
    %1467 = vmatpush2.xpose.msra.mxu0 0.0
    %1468 = vmatprep.subr.mxu0 0.0
    %1469 = vmatpush2.xpose.msra.mxu0 0.0
    %1470 = vmatprep.subr.mxu0 0.0
    %1471 = vmatpush2.xpose.msra.mxu0 0.0
    %1472 = vmatprep.subr.mxu0 0.0
    %1473 = vmatpush2.xpose.msra.mxu0 0.0
    %1474 = vmatprep.subr.mxu0 0.0
    %1475 = vmatpush2.xpose.msra.mxu0 0.0
    %1476 = vmatprep.subr.mxu0 0.0
    %1477 = vmatpush2.xpose.msra.mxu0 0.0
    %1478 = vmatprep.subr.mxu0 0.0
    %1479 = vmatpush2.xpose.msra.mxu0 0.0
    %1480 = vmatprep.subr.mxu0 0.0
    %1481 = vmatpush2.xpose.msra.mxu0 0.0
    %1482 = vmatprep.mubr.f32.mxu0 0.0
    %1483 = vmatmul.mubr.f32.gmra.mxu0 %v1414
    %v1484 = vpop.f32.mrf.mxu0
    %v1485 = vadd.f32 0.0, %v1484
    %v1486 = vpop.f32.mrf.mxu0
    %1487 = vdwg.mxu0
    %v1488 = vsel %vm175, %v1485, -inf
    %1489 = vmax.xlane.f32.xlu0 %v1488
    %v1490 = vpop.xlane.xlu0 %1489
    %v1491 = vsub.f32 %v1485, %v1490
    %v1492 = vmul.f32 %v1491, 1.442695
    %v1493 = vpow.pop %v1492
    %v1494 = vsel %vm175, %v1493, 0.0
    %1495 = vadd.xlane.f32.xlu0 %v1494
    %v1496 = vpop.xlane.xlu0 %1495
    %v1497 = vrcp.pop %v1496
    %1498 = vrot.lane.b32.xlu0 %v153, 40
    %v1499 = vpop.permute.xlu0 %1498
    %v1502 = vsel %vm175, %v1493, 0
    %1504 = vmatprep.subr.mxu0 0.0
    %1505 = vmatpush1.msra.mxu0 0.0
    %1506 = vmatprep.subr.mxu0 0.0
    %1507 = vmatpush1.msra.mxu0 0.0
    %1508 = vmatprep.subr.mxu0 0.0
    %1509 = vmatpush1.msra.mxu0 0.0
    %1510 = vmatprep.subr.mxu0 0.0
    %1511 = vmatpush1.msra.mxu0 0.0
    %1512 = vmatprep.subr.mxu0 0.0
    %1513 = vmatpush1.msra.mxu0 0.0
    %1514 = vmatprep.subr.mxu0 0.0
    %1515 = vmatpush1.msra.mxu0 0.0
    %1516 = vmatprep.subr.mxu0 0.0
    %1517 = vmatpush1.msra.mxu0 0.0
    %1518 = vmatprep.subr.mxu0 0.0
    %1519 = vmatpush1.msra.mxu0 0.0
    %1520 = vmatprep.subr.mxu0 0.0
    %1521 = vmatpush1.msra.mxu0 0.0
    %1522 = vmatprep.subr.mxu0 0.0
    %1523 = vmatpush1.msra.mxu0 0.0
    %1524 = vmatprep.subr.mxu0 0.0
    %1525 = vmatpush1.msra.mxu0 0.0
    %1526 = vmatprep.subr.mxu0 0.0
    %1527 = vmatpush1.msra.mxu0 0.0
    %1528 = vmatprep.subr.mxu0 0.0
    %1529 = vmatpush1.msra.mxu0 0.0
    %1530 = vmatprep.subr.mxu0 0.0
    %1531 = vmatpush1.msra.mxu0 0.0
    %1532 = vmatprep.subr.mxu0 0.0
    %1533 = vmatpush1.msra.mxu0 0.0
    %1534 = vmatprep.subr.mxu0 0.0
    %1535 = vmatpush1.msra.mxu0 %v1499
    %1536 = vmatprep.subr.mxu0 0.0
    %1537 = vmatpush2.msra.mxu0 0.0
    %1538 = vmatprep.subr.mxu0 0.0
    %1539 = vmatpush2.msra.mxu0 0.0
    %1540 = vmatprep.subr.mxu0 0.0
    %1541 = vmatpush2.msra.mxu0 0.0
    %1542 = vmatprep.subr.mxu0 0.0
    %1543 = vmatpush2.msra.mxu0 0.0
    %1544 = vmatprep.subr.mxu0 0.0
    %1545 = vmatpush2.msra.mxu0 0.0
    %1546 = vmatprep.subr.mxu0 0.0
    %1547 = vmatpush2.msra.mxu0 0.0
    %1548 = vmatprep.subr.mxu0 0.0
    %1549 = vmatpush2.msra.mxu0 0.0
    %1550 = vmatprep.subr.mxu0 0.0
    %1551 = vmatpush2.msra.mxu0 0.0
    %1552 = vmatprep.subr.mxu0 0.0
    %1553 = vmatpush2.msra.mxu0 0.0
    %1554 = vmatprep.subr.mxu0 0.0
    %1555 = vmatpush2.msra.mxu0 0.0
    %1556 = vmatprep.subr.mxu0 0.0
    %1557 = vmatpush2.msra.mxu0 0.0
    %1558 = vmatprep.subr.mxu0 0.0
    %1559 = vmatpush2.msra.mxu0 0.0
    %1560 = vmatprep.subr.mxu0 0.0
    %1561 = vmatpush2.msra.mxu0 0.0
    %1562 = vmatprep.subr.mxu0 0.0
    %1563 = vmatpush2.msra.mxu0 0.0
    %1564 = vmatprep.subr.mxu0 0.0
    %1565 = vmatpush2.msra.mxu0 0.0
    %1566 = vmatprep.subr.mxu0 0.0
    %1567 = vmatpush2.msra.mxu0 0.0
    %1568 = vmatprep.mubr.f32.mxu0 0.0
    %1569 = vmatmul.mubr.f32.gmra.mxu0 %v1502
    %v1570 = vpop.f32.mrf.mxu0
    %v1571 = vadd.f32 0.0, %v1570
    %v1572 = vpop.f32.mrf.mxu0
    %1573 = vdwg.mxu0
    %v1574 = vmul.f32 %v1571, %v1497
    %1575 = vrot.lane.b32.xlu0 %v158, 104
    %v1576 = vpop.permute.xlu0 %1575
    %1577 = vrot.lane.b32.xlu0 %v158, 72
    %v1578 = vpop.permute.xlu0 %1577
    %v1579 = vsel %vm175, %v1576, 0
    %v1581 = vsel %vm175, %v1578, 0
    %1583 = vmatprep.subr.mxu0 0.0
    %1584 = vmatpush1.xpose.msra.mxu0 0.0
    %1585 = vmatprep.subr.mxu0 0.0
    %1586 = vmatpush1.xpose.msra.mxu0 0.0
    %1587 = vmatprep.subr.mxu0 0.0
    %1588 = vmatpush1.xpose.msra.mxu0 0.0
    %1589 = vmatprep.subr.mxu0 0.0
    %1590 = vmatpush1.xpose.msra.mxu0 0.0
    %1591 = vmatprep.subr.mxu0 0.0
    %1592 = vmatpush1.xpose.msra.mxu0 0.0
    %1593 = vmatprep.subr.mxu0 0.0
    %1594 = vmatpush1.xpose.msra.mxu0 0.0
    %1595 = vmatprep.subr.mxu0 0.0
    %1596 = vmatpush1.xpose.msra.mxu0 0.0
    %1597 = vmatprep.subr.mxu0 0.0
    %1598 = vmatpush1.xpose.msra.mxu0 0.0
    %1599 = vmatprep.subr.mxu0 0.0
    %1600 = vmatpush1.xpose.msra.mxu0 0.0
    %1601 = vmatprep.subr.mxu0 0.0
    %1602 = vmatpush1.xpose.msra.mxu0 0.0
    %1603 = vmatprep.subr.mxu0 0.0
    %1604 = vmatpush1.xpose.msra.mxu0 0.0
    %1605 = vmatprep.subr.mxu0 0.0
    %1606 = vmatpush1.xpose.msra.mxu0 0.0
    %1607 = vmatprep.subr.mxu0 0.0
    %1608 = vmatpush1.xpose.msra.mxu0 0.0
    %1609 = vmatprep.subr.mxu0 0.0
    %1610 = vmatpush1.xpose.msra.mxu0 0.0
    %1611 = vmatprep.subr.mxu0 0.0
    %1612 = vmatpush1.xpose.msra.mxu0 0.0
    %1613 = vmatprep.subr.mxu0 0.0
    %1614 = vmatpush1.xpose.msra.mxu0 %v1581
    %1615 = vmatprep.subr.mxu0 0.0
    %1616 = vmatpush2.xpose.msra.mxu0 0.0
    %1617 = vmatprep.subr.mxu0 0.0
    %1618 = vmatpush2.xpose.msra.mxu0 0.0
    %1619 = vmatprep.subr.mxu0 0.0
    %1620 = vmatpush2.xpose.msra.mxu0 0.0
    %1621 = vmatprep.subr.mxu0 0.0
    %1622 = vmatpush2.xpose.msra.mxu0 0.0
    %1623 = vmatprep.subr.mxu0 0.0
    %1624 = vmatpush2.xpose.msra.mxu0 0.0
    %1625 = vmatprep.subr.mxu0 0.0
    %1626 = vmatpush2.xpose.msra.mxu0 0.0
    %1627 = vmatprep.subr.mxu0 0.0
    %1628 = vmatpush2.xpose.msra.mxu0 0.0
    %1629 = vmatprep.subr.mxu0 0.0
    %1630 = vmatpush2.xpose.msra.mxu0 0.0
    %1631 = vmatprep.subr.mxu0 0.0
    %1632 = vmatpush2.xpose.msra.mxu0 0.0
    %1633 = vmatprep.subr.mxu0 0.0
    %1634 = vmatpush2.xpose.msra.mxu0 0.0
    %1635 = vmatprep.subr.mxu0 0.0
    %1636 = vmatpush2.xpose.msra.mxu0 0.0
    %1637 = vmatprep.subr.mxu0 0.0
    %1638 = vmatpush2.xpose.msra.mxu0 0.0
    %1639 = vmatprep.subr.mxu0 0.0
    %1640 = vmatpush2.xpose.msra.mxu0 0.0
    %1641 = vmatprep.subr.mxu0 0.0
    %1642 = vmatpush2.xpose.msra.mxu0 0.0
    %1643 = vmatprep.subr.mxu0 0.0
    %1644 = vmatpush2.xpose.msra.mxu0 0.0
    %1645 = vmatprep.subr.mxu0 0.0
    %1646 = vmatpush2.xpose.msra.mxu0 0.0
    %1647 = vmatprep.mubr.f32.mxu0 0.0
    %1648 = vmatmul.mubr.f32.gmra.mxu0 %v1579
    %v1649 = vpop.f32.mrf.mxu0
    %v1650 = vadd.f32 0.0, %v1649
    %v1651 = vpop.f32.mrf.mxu0
    %1652 = vdwg.mxu0
    %v1653 = vsel %vm175, %v1650, -inf
    %1654 = vmax.xlane.f32.xlu0 %v1653
    %v1655 = vpop.xlane.xlu0 %1654
    %v1656 = vsub.f32 %v1650, %v1655
    %v1657 = vmul.f32 %v1656, 1.442695
    %v1658 = vpow.pop %v1657
    %v1659 = vsel %vm175, %v1658, 0.0
    %1660 = vadd.xlane.f32.xlu0 %v1659
    %v1661 = vpop.xlane.xlu0 %1660
    %v1662 = vrcp.pop %v1661
    %1663 = vrot.lane.b32.xlu0 %v158, 40
    %v1664 = vpop.permute.xlu0 %1663
    %v1667 = vsel %vm175, %v1658, 0
    %1669 = vmatprep.subr.mxu0 0.0
    %1670 = vmatpush1.msra.mxu0 0.0
    %1671 = vmatprep.subr.mxu0 0.0
    %1672 = vmatpush1.msra.mxu0 0.0
    %1673 = vmatprep.subr.mxu0 0.0
    %1674 = vmatpush1.msra.mxu0 0.0
    %1675 = vmatprep.subr.mxu0 0.0
    %1676 = vmatpush1.msra.mxu0 0.0
    %1677 = vmatprep.subr.mxu0 0.0
    %1678 = vmatpush1.msra.mxu0 0.0
    %1679 = vmatprep.subr.mxu0 0.0
    %1680 = vmatpush1.msra.mxu0 0.0
    %1681 = vmatprep.subr.mxu0 0.0
    %1682 = vmatpush1.msra.mxu0 0.0
    %1683 = vmatprep.subr.mxu0 0.0
    %1684 = vmatpush1.msra.mxu0 0.0
    %1685 = vmatprep.subr.mxu0 0.0
    %1686 = vmatpush1.msra.mxu0 0.0
    %1687 = vmatprep.subr.mxu0 0.0
    %1688 = vmatpush1.msra.mxu0 0.0
    %1689 = vmatprep.subr.mxu0 0.0
    %1690 = vmatpush1.msra.mxu0 0.0
    %1691 = vmatprep.subr.mxu0 0.0
    %1692 = vmatpush1.msra.mxu0 0.0
    %1693 = vmatprep.subr.mxu0 0.0
    %1694 = vmatpush1.msra.mxu0 0.0
    %1695 = vmatprep.subr.mxu0 0.0
    %1696 = vmatpush1.msra.mxu0 0.0
    %1697 = vmatprep.subr.mxu0 0.0
    %1698 = vmatpush1.msra.mxu0 0.0
    %1699 = vmatprep.subr.mxu0 0.0
    %1700 = vmatpush1.msra.mxu0 %v1664
    %1701 = vmatprep.subr.mxu0 0.0
    %1702 = vmatpush2.msra.mxu0 0.0
    %1703 = vmatprep.subr.mxu0 0.0
    %1704 = vmatpush2.msra.mxu0 0.0
    %1705 = vmatprep.subr.mxu0 0.0
    %1706 = vmatpush2.msra.mxu0 0.0
    %1707 = vmatprep.subr.mxu0 0.0
    %1708 = vmatpush2.msra.mxu0 0.0
    %1709 = vmatprep.subr.mxu0 0.0
    %1710 = vmatpush2.msra.mxu0 0.0
    %1711 = vmatprep.subr.mxu0 0.0
    %1712 = vmatpush2.msra.mxu0 0.0
    %1713 = vmatprep.subr.mxu0 0.0
    %1714 = vmatpush2.msra.mxu0 0.0
    %1715 = vmatprep.subr.mxu0 0.0
    %1716 = vmatpush2.msra.mxu0 0.0
    %1717 = vmatprep.subr.mxu0 0.0
    %1718 = vmatpush2.msra.mxu0 0.0
    %1719 = vmatprep.subr.mxu0 0.0
    %1720 = vmatpush2.msra.mxu0 0.0
    %1721 = vmatprep.subr.mxu0 0.0
    %1722 = vmatpush2.msra.mxu0 0.0
    %1723 = vmatprep.subr.mxu0 0.0
    %1724 = vmatpush2.msra.mxu0 0.0
    %1725 = vmatprep.subr.mxu0 0.0
    %1726 = vmatpush2.msra.mxu0 0.0
    %1727 = vmatprep.subr.mxu0 0.0
    %1728 = vmatpush2.msra.mxu0 0.0
    %1729 = vmatprep.subr.mxu0 0.0
    %1730 = vmatpush2.msra.mxu0 0.0
    %1731 = vmatprep.subr.mxu0 0.0
    %1732 = vmatpush2.msra.mxu0 0.0
    %1733 = vmatprep.mubr.f32.mxu0 0.0
    %1734 = vmatmul.mubr.f32.gmra.mxu0 %v1667
    %v1735 = vpop.f32.mrf.mxu0
    %v1736 = vadd.f32 0.0, %v1735
    %v1737 = vpop.f32.mrf.mxu0
    %1738 = vdwg.mxu0
    %v1739 = vmul.f32 %v1736, %v1662
    %v1741 = vsel %vm175, %v1574, 0
    %v1744 = vsel %vm175, %v1739, 0
    %1746 = vmatprep.subr.mxu0 0.0
    %1747 = vmatpush1.msra.mxu0 0.0
    %1748 = vmatprep.subr.mxu0 0.0
    %1749 = vmatpush1.msra.mxu0 0.0
    %1750 = vmatprep.subr.mxu0 0.0
    %1751 = vmatpush1.msra.mxu0 0.0
    %1752 = vmatprep.subr.mxu0 0.0
    %1753 = vmatpush1.msra.mxu0 0.0
    %1754 = vmatprep.subr.mxu0 0.0
    %1755 = vmatpush1.msra.mxu0 0.0
    %1756 = vmatprep.subr.mxu0 0.0
    %1757 = vmatpush1.msra.mxu0 0.0
    %1758 = vmatprep.subr.mxu0 0.0
    %1759 = vmatpush1.msra.mxu0 0.0
    %1760 = vmatprep.subr.mxu0 0.0
    %1761 = vmatpush1.msra.mxu0 0.0
    %1762 = vmatprep.subr.mxu0 0.0
    %1763 = vmatpush1.msra.mxu0 0.0
    %1764 = vmatprep.subr.mxu0 0.0
    %1765 = vmatpush1.msra.mxu0 0.0
    %1766 = vmatprep.subr.mxu0 0.0
    %1767 = vmatpush1.msra.mxu0 0.0
    %1768 = vmatprep.subr.mxu0 0.0
    %1769 = vmatpush1.msra.mxu0 0.0
    %1770 = vmatprep.subr.mxu0 0.0
    %1771 = vmatpush1.msra.mxu0 0.0
    %1772 = vmatprep.subr.mxu0 0.0
    %1773 = vmatpush1.msra.mxu0 0.0
    %1774 = vmatprep.subr.mxu0 0.0
    %1775 = vmatpush1.msra.mxu0 0.0
    %1776 = vmatprep.subr.mxu0 0.0
    %1777 = vmatpush1.msra.mxu0 %v164
    %1778 = vmatprep.subr.mxu0 0.0
    %1779 = vmatpush2.msra.mxu0 0.0
    %1780 = vmatprep.subr.mxu0 0.0
    %1781 = vmatpush2.msra.mxu0 0.0
    %1782 = vmatprep.subr.mxu0 0.0
    %1783 = vmatpush2.msra.mxu0 0.0
    %1784 = vmatprep.subr.mxu0 0.0
    %1785 = vmatpush2.msra.mxu0 0.0
    %1786 = vmatprep.subr.mxu0 0.0
    %1787 = vmatpush2.msra.mxu0 0.0
    %1788 = vmatprep.subr.mxu0 0.0
    %1789 = vmatpush2.msra.mxu0 0.0
    %1790 = vmatprep.subr.mxu0 0.0
    %1791 = vmatpush2.msra.mxu0 0.0
    %1792 = vmatprep.subr.mxu0 0.0
    %1793 = vmatpush2.msra.mxu0 0.0
    %1794 = vmatprep.subr.mxu0 0.0
    %1795 = vmatpush2.msra.mxu0 0.0
    %1796 = vmatprep.subr.mxu0 0.0
    %1797 = vmatpush2.msra.mxu0 0.0
    %1798 = vmatprep.subr.mxu0 0.0
    %1799 = vmatpush2.msra.mxu0 0.0
    %1800 = vmatprep.subr.mxu0 0.0
    %1801 = vmatpush2.msra.mxu0 0.0
    %1802 = vmatprep.subr.mxu0 0.0
    %1803 = vmatpush2.msra.mxu0 0.0
    %1804 = vmatprep.subr.mxu0 0.0
    %1805 = vmatpush2.msra.mxu0 0.0
    %1806 = vmatprep.subr.mxu0 0.0
    %1807 = vmatpush2.msra.mxu0 0.0
    %1808 = vmatprep.subr.mxu0 0.0
    %1809 = vmatpush2.msra.mxu0 0.0
    %1810 = vmatprep.mubr.f32.mxu0 0.0
    %1811 = vmatmul.mubr.f32.gmra.mxu0 %v1741
    %v1812 = vpop.f32.mrf.mxu0
    %v1813 = vadd.f32 0.0, %v1812
    %v1814 = vpop.f32.mrf.mxu0
    %1815 = vmatprep.mubr.f32.mxu0 0.0
    %1816 = vmatmul.mubr.f32.gmra.mxu0 %v1744
    %v1817 = vpop.f32.mrf.mxu0
    %v1818 = vadd.f32 0.0, %v1817
    %v1819 = vpop.f32.mrf.mxu0
    %1820 = vdwg.mxu0
    %v1821 = vadd.f32 %v1408, %v1813
    %v1822 = vadd.f32 %v1409, %v1818
    %vm1823 = vcmask 261120
    %1824 = vst.msk [vmem:[#allocation8] sm:$0xff] %vm1823, %v1821
    %1825 = vst.msk [vmem:[#allocation8 + $0x8] sm:$0xff] %vm1823, %v1822
    // Predicated region
    $region34: #{tpu_custom_call.1} parent=1 // pred_check
      _
    $region35: #{tpu_custom_call.1} parent=1 // pred_check_branch
      %1827 = sbr.rel (0) target = $region37
    $region36: #{tpu_custom_call.1} parent=1 // pred_region
      %s1829 = ssub.s32 256, 256
      %1830 = vsyncadd [#allocation4], %s1829
      %s1831 = sshll.u32 [#allocation8], 4
      %s1832 = int_to_ptr.vmem [resolvable:$true] %s1831
      %1837 = dma.vmem_to_hbm [thread:$0]  %s1832, 256, %s5, [#allocation4], 128, 128, 8
    $region37: #{tpu_custom_call.1} parent=1 // pred_fallthru
      _
    // Predicated region
    $region38: #{tpu_custom_call.1} parent=1 // pred_check
      _
    $region39: #{tpu_custom_call.1} parent=1 // pred_check_branch
      %1839 = sbr.rel (0) target = $region41
    $region40: #{tpu_custom_call.1} parent=1 // pred_region
      %1840 = dma.done [#allocation4], 256
    $region41: #{tpu_custom_call.1} parent=1 // pred_fallthru
      _
    %1841 = vsyncpa [#allocation3], 1
    %1842 = vsyncpa [#allocation6], 1
    %1843 = vsyncpa [#allocation4], 1

</llo_original>
